<compile_context>
chip_gen: v5e
topology: v5e:2x2
jax: 0.10.0
libtpu: 0.0.40
codegen_flags: <defaults>
</compile_context>

<pallas_src>
import jax
import jax.numpy as jnp
from jax.experimental import pallas as pl
from jax.experimental.pallas import tpu as pltpu

NEG_INF = -1e30


# -------------------- fused Roland forward kernel --------------------
def roland_kernel(
    edge_ref,                                               # SMEM (2, E) int32
    x_ref, wl_ref, bl_ref, wr_ref, br_ref, att_ref, gatb_ref,
    h0_ref,
    wir_ref, wiz_ref, win_ref,
    whr_ref, whz_ref, whn_ref,
    bir_ref, biz_ref, bin_ref,
    bhr_ref, bhz_ref, bhn_ref,
    w1_ref, b1_ref, w2p_ref, b2p_ref,
    o_ref,                                                  # (N, 128) f32
    hseq_ref,                                               # scratch VMEM (N, H)
):
    n = x_ref.shape[0]
    h = wl_ref.shape[1]
    n_edges = edge_ref.shape[1]

    # ---- dense adjacency mask built in-kernel (adj[dst, src] + self loops) ----
    rows = jax.lax.broadcasted_iota(jnp.int32, (n, n), 0)   # destination i
    cols = jax.lax.broadcasted_iota(jnp.int32, (n, n), 1)   # source j
    adj = rows == cols                                      # self loops
    for k in range(n_edges):                                # static E, unrolled
        src = edge_ref[0, k]
        dst = edge_ref[1, k]
        adj = jnp.logical_or(adj, jnp.logical_and(rows == dst, cols == src))

    # ---- GATv2Conv (heads=1) + ReLU ----
    x = x_ref[...]                                                      # (N, Din)
    xl = jnp.dot(x, wl_ref[...], preferred_element_type=jnp.float32) + bl_ref[...]
    xr = jnp.dot(x, wr_ref[...], preferred_element_type=jnp.float32) + br_ref[...]
    # s[i, j, :] = x_l[j] + x_r[i]   (GATv2: LeakyReLU before attention dot)
    s = xl[None, :, :] + xr[:, None, :]                                 # (N, N, H)
    s = jnp.where(s >= 0, s, 0.2 * s)                                   # LeakyReLU(0.2)
    e = jnp.sum(s * att_ref[...].reshape(1, 1, h), axis=-1)             # (N, N)
    e = jnp.where(adj, e, NEG_INF)                                      # mask non-edges
    m = jnp.max(e, axis=-1, keepdims=True)
    p = jnp.where(adj, jnp.exp(e - m), 0.0)
    alpha = p / jnp.sum(p, axis=-1, keepdims=True)                      # softmax over in-edges
    h_gat = jnp.dot(alpha, xl, preferred_element_type=jnp.float32) + gatb_ref[...]
    h_gat = jnp.maximum(h_gat, 0.0)                                     # ReLU  (N, H)

    # ---- GRU: input-gate projections hoisted out of the serial loop ----
    gi_r = jnp.dot(h_gat, wir_ref[...], preferred_element_type=jnp.float32) + bir_ref[...]
    gi_z = jnp.dot(h_gat, wiz_ref[...], preferred_element_type=jnp.float32) + biz_ref[...]
    gi_n = jnp.dot(h_gat, win_ref[...], preferred_element_type=jnp.float32) + bin_ref[...]

    # Serial recurrence, fully unrolled (static N=8) -> static sublane offsets.
    h_prev = h0_ref[...]                                                # (1, H)
    for t in range(n):
        gh_r = jnp.dot(h_prev, whr_ref[...], preferred_element_type=jnp.float32) + bhr_ref[...]
        gh_z = jnp.dot(h_prev, whz_ref[...], preferred_element_type=jnp.float32) + bhz_ref[...]
        gh_n = jnp.dot(h_prev, whn_ref[...], preferred_element_type=jnp.float32) + bhn_ref[...]
        r = jax.nn.sigmoid(gi_r[t:t + 1, :] + gh_r)
        z = jax.nn.sigmoid(gi_z[t:t + 1, :] + gh_z)
        ng = jnp.tanh(gi_n[t:t + 1, :] + r * gh_n)
        h_prev = (1.0 - z) * ng + z * h_prev
        hseq_ref[pl.ds(t, 1), :] = h_prev

    # ---- Linear -> ReLU -> Linear (lane-padded to 128 for an unmasked store) ----
    h1 = jnp.dot(hseq_ref[...], w1_ref[...], preferred_element_type=jnp.float32) + b1_ref[...]
    h1 = jnp.maximum(h1, 0.0)
    o_ref[...] = jnp.dot(h1, w2p_ref[...], preferred_element_type=jnp.float32) + b2p_ref[...]


def roland_forward(x, edge_index, params):
    n = x.shape[0]
    h = params["wl"].shape[1]
    p = params
    args = (
        edge_index.astype(jnp.int32), x,
        p["wl"], p["bl"], p["wr"], p["br"], p["att"], p["gat_bias"],
        p["h0"],
        p["wir"], p["wiz"], p["win"],
        p["whr"], p["whz"], p["whn"],
        p["bir"], p["biz"], p["bin"],
        p["bhr"], p["bhz"], p["bhn"],
        p["w1"], p["b1"], p["w2p"], p["b2p"],
    )
    smem = pl.BlockSpec(memory_space=pltpu.MemorySpace.SMEM)
    vmem = pl.BlockSpec(memory_space=pltpu.MemorySpace.VMEM)
    out_padded = pl.pallas_call(
        roland_kernel,
        out_shape=jax.ShapeDtypeStruct((n, 128), jnp.float32),
        in_specs=[smem] + [vmem] * (len(args) - 1),
        out_specs=vmem,
        scratch_shapes=[pltpu.VMEM((n, h), jnp.float32)],
    )(*args)
    return out_padded[:, :1]


# -------------------- pure-JAX reference (for correctness check) --------------------
def roland_reference(x, edge_index, params):
    n = x.shape[0]
    H = params["wl"].shape[1]
    adj = jnp.zeros((n, n), jnp.float32)
    adj = adj.at[edge_index[1], edge_index[0]].set(1.0)
    adj = adj.at[jnp.arange(n), jnp.arange(n)].set(1.0)

    xl = x @ params["wl"] + params["bl"]
    xr = x @ params["wr"] + params["br"]
    s = xl[None, :, :] + xr[:, None, :]
    s = jnp.where(s >= 0, s, 0.2 * s)
    e = jnp.sum(s * params["att"].reshape(1, 1, H), axis=-1)
    e = jnp.where(adj > 0, e, NEG_INF)
    p = jnp.exp(e - e.max(-1, keepdims=True)) * adj
    alpha = p / p.sum(-1, keepdims=True)
    h = jnp.maximum(alpha @ xl + params["gat_bias"], 0.0)

    def step(hprev, x_row):
        x_t = x_row[None, :]
        r = jax.nn.sigmoid(x_t @ params["wir"] + params["bir"]
                           + hprev @ params["whr"] + params["bhr"])
        z = jax.nn.sigmoid(x_t @ params["wiz"] + params["biz"]
                           + hprev @ params["whz"] + params["bhz"])
        ng = jnp.tanh(x_t @ params["win"] + params["bin"]
                      + r * (hprev @ params["whn"] + params["bhn"]))
        hn = (1.0 - z) * ng + z * hprev
        return hn, hn[0]

    _, seq = jax.lax.scan(step, params["h0"], h)
    out = jnp.maximum(seq @ params["w1"] + params["b1"], 0.0) @ params["w2"] + params["b2"]
    return out


if __name__ == "__main__":
    NUM_NODES, DIM_IN, HIDDEN = 8, 16, 32  # num_layers = 2

    key = jax.random.PRNGKey(0)
    ks = jax.random.split(key, 32)

    def rnd(k, shape, scale=0.2):
        return jax.random.normal(k, shape, jnp.float32) * scale

    params = {
        # GATv2Conv(dim_in, hidden), heads=1
        "wl": rnd(ks[0], (DIM_IN, HIDDEN)),
        "bl": rnd(ks[1], (1, HIDDEN)),
        "wr": rnd(ks[2], (DIM_IN, HIDDEN)),
        "br": rnd(ks[3], (1, HIDDEN)),
        "att": rnd(ks[4], (1, HIDDEN)),
        "gat_bias": rnd(ks[5], (1, HIDDEN)),
        # GRU(hidden, hidden) with PyTorch gate order (r, z, n); per-gate weights
        # stored separately, pre-transposed to (in, H).
        "h0": rnd(ks[6], (1, HIDDEN)),
        "wir": rnd(ks[7], (HIDDEN, HIDDEN)),
        "wiz": rnd(ks[8], (HIDDEN, HIDDEN)),
        "win": rnd(ks[9], (HIDDEN, HIDDEN)),
        "whr": rnd(ks[10], (HIDDEN, HIDDEN)),
        "whz": rnd(ks[11], (HIDDEN, HIDDEN)),
        "whn": rnd(ks[12], (HIDDEN, HIDDEN)),
        "bir": rnd(ks[13], (1, HIDDEN)),
        "biz": rnd(ks[14], (1, HIDDEN)),
        "bin": rnd(ks[15], (1, HIDDEN)),
        "bhr": rnd(ks[16], (1, HIDDEN)),
        "bhz": rnd(ks[17], (1, HIDDEN)),
        "bhn": rnd(ks[18], (1, HIDDEN)),
        # lin(hidden, hidden), lin2(hidden, 1)
        "w1": rnd(ks[19], (HIDDEN, HIDDEN)),
        "b1": rnd(ks[20], (1, HIDDEN)),
        "w2": rnd(ks[21], (HIDDEN, 1)),
        "b2": rnd(ks[22], (1, 1)),
    }
    # lane-padded final-layer params (built once) so the kernel output store is lane-dense
    params["w2p"] = jnp.pad(params["w2"], ((0, 0), (0, 127)))
    params["b2p"] = jnp.pad(params["b2"], ((0, 0), (0, 127)))

    x = rnd(ks[23], (NUM_NODES, DIM_IN), scale=1.0)
    edge_index = jnp.array(
        [[0, 1, 2, 3, 4, 5, 6, 7, 0, 2, 4, 6],
         [1, 2, 3, 4, 5, 6, 7, 0, 4, 6, 0, 2]], dtype=jnp.int32)

    # TODO(synk): torch.nn.GRU returns (output, h_n); the literal PyTorch forward would
    # feed that tuple into nn.Linear (an error) — we take the output sequence.
    out = roland_forward(x, edge_index, params)
    out = jax.block_until_ready(out)

    ref = roland_reference(x, edge_index, params)
    assert out.shape == (NUM_NODES, 1)
    assert bool(jnp.all(jnp.isfinite(out)))
    assert bool(jnp.allclose(out, ref, rtol=1e-3, atol=1e-3)), (out, ref)

    print("KERNEL_OK")
</pallas_src>

<mosaic_0001>
module attributes {stable_mosaic.version = 11 : i64} {
  func.func @roland_kernel(%arg0: memref<2x12xi32, #tpu.memory_space<smem>>, %arg1: memref<8x16xf32, #tpu.memory_space<vmem>>, %arg2: memref<16x32xf32, #tpu.memory_space<vmem>>, %arg3: memref<1x32xf32, #tpu.memory_space<vmem>>, %arg4: memref<16x32xf32, #tpu.memory_space<vmem>>, %arg5: memref<1x32xf32, #tpu.memory_space<vmem>>, %arg6: memref<1x32xf32, #tpu.memory_space<vmem>>, %arg7: memref<1x32xf32, #tpu.memory_space<vmem>>, %arg8: memref<1x32xf32, #tpu.memory_space<vmem>>, %arg9: memref<32x32xf32, #tpu.memory_space<vmem>>, %arg10: memref<32x32xf32, #tpu.memory_space<vmem>>, %arg11: memref<32x32xf32, #tpu.memory_space<vmem>>, %arg12: memref<32x32xf32, #tpu.memory_space<vmem>>, %arg13: memref<32x32xf32, #tpu.memory_space<vmem>>, %arg14: memref<32x32xf32, #tpu.memory_space<vmem>>, %arg15: memref<1x32xf32, #tpu.memory_space<vmem>>, %arg16: memref<1x32xf32, #tpu.memory_space<vmem>>, %arg17: memref<1x32xf32, #tpu.memory_space<vmem>>, %arg18: memref<1x32xf32, #tpu.memory_space<vmem>>, %arg19: memref<1x32xf32, #tpu.memory_space<vmem>>, %arg20: memref<1x32xf32, #tpu.memory_space<vmem>>, %arg21: memref<32x32xf32, #tpu.memory_space<vmem>>, %arg22: memref<1x32xf32, #tpu.memory_space<vmem>>, %arg23: memref<32x128xf32, #tpu.memory_space<vmem>>, %arg24: memref<1x128xf32, #tpu.memory_space<vmem>>, %arg25: memref<8x128xf32, #tpu.memory_space<vmem>>, %arg26: memref<8x32xf32, #tpu.memory_space<vmem>>) attributes {dimension_semantics = [], scalar_prefetch = 0 : i64, scratch_operands = 1 : i64, tpu.core_type = #tpu.core_type<tc>} {
    %0 = tpu.iota {dimensions = array<i32: 0>} : vector<8x8xi32>
    %1 = tpu.iota {dimensions = array<i32: 1>} : vector<8x8xi32>
    %2 = arith.cmpi eq, %0, %1 : vector<8x8xi32>
    %c0 = arith.constant 0 : index
    %c0_0 = arith.constant 0 : index
    %3 = memref.load %arg0[%c0, %c0_0] : memref<2x12xi32, #tpu.memory_space<smem>>
    %c1 = arith.constant 1 : index
    %c0_1 = arith.constant 0 : index
    %4 = memref.load %arg0[%c1, %c0_1] : memref<2x12xi32, #tpu.memory_space<smem>>
    %5 = vector.broadcast %4 : i32 to vector<8x8xi32>
    %6 = arith.cmpi eq, %0, %5 : vector<8x8xi32>
    %7 = vector.broadcast %3 : i32 to vector<8x8xi32>
    %8 = arith.cmpi eq, %1, %7 : vector<8x8xi32>
    %9 = arith.andi %6, %8 : vector<8x8xi1>
    %10 = arith.ori %2, %9 : vector<8x8xi1>
    %c0_2 = arith.constant 0 : index
    %c1_3 = arith.constant 1 : index
    %11 = memref.load %arg0[%c0_2, %c1_3] : memref<2x12xi32, #tpu.memory_space<smem>>
    %c1_4 = arith.constant 1 : index
    %c1_5 = arith.constant 1 : index
    %12 = memref.load %arg0[%c1_4, %c1_5] : memref<2x12xi32, #tpu.memory_space<smem>>
    %13 = vector.broadcast %12 : i32 to vector<8x8xi32>
    %14 = arith.cmpi eq, %0, %13 : vector<8x8xi32>
    %15 = vector.broadcast %11 : i32 to vector<8x8xi32>
    %16 = arith.cmpi eq, %1, %15 : vector<8x8xi32>
    %17 = arith.andi %14, %16 : vector<8x8xi1>
    %18 = arith.ori %10, %17 : vector<8x8xi1>
    %c0_6 = arith.constant 0 : index
    %c2 = arith.constant 2 : index
    %19 = memref.load %arg0[%c0_6, %c2] : memref<2x12xi32, #tpu.memory_space<smem>>
    %c1_7 = arith.constant 1 : index
    %c2_8 = arith.constant 2 : index
    %20 = memref.load %arg0[%c1_7, %c2_8] : memref<2x12xi32, #tpu.memory_space<smem>>
    %21 = vector.broadcast %20 : i32 to vector<8x8xi32>
    %22 = arith.cmpi eq, %0, %21 : vector<8x8xi32>
    %23 = vector.broadcast %19 : i32 to vector<8x8xi32>
    %24 = arith.cmpi eq, %1, %23 : vector<8x8xi32>
    %25 = arith.andi %22, %24 : vector<8x8xi1>
    %26 = arith.ori %18, %25 : vector<8x8xi1>
    %c0_9 = arith.constant 0 : index
    %c3 = arith.constant 3 : index
    %27 = memref.load %arg0[%c0_9, %c3] : memref<2x12xi32, #tpu.memory_space<smem>>
    %c1_10 = arith.constant 1 : index
    %c3_11 = arith.constant 3 : index
    %28 = memref.load %arg0[%c1_10, %c3_11] : memref<2x12xi32, #tpu.memory_space<smem>>
    %29 = vector.broadcast %28 : i32 to vector<8x8xi32>
    %30 = arith.cmpi eq, %0, %29 : vector<8x8xi32>
    %31 = vector.broadcast %27 : i32 to vector<8x8xi32>
    %32 = arith.cmpi eq, %1, %31 : vector<8x8xi32>
    %33 = arith.andi %30, %32 : vector<8x8xi1>
    %34 = arith.ori %26, %33 : vector<8x8xi1>
    %c0_12 = arith.constant 0 : index
    %c4 = arith.constant 4 : index
    %35 = memref.load %arg0[%c0_12, %c4] : memref<2x12xi32, #tpu.memory_space<smem>>
    %c1_13 = arith.constant 1 : index
    %c4_14 = arith.constant 4 : index
    %36 = memref.load %arg0[%c1_13, %c4_14] : memref<2x12xi32, #tpu.memory_space<smem>>
    %37 = vector.broadcast %36 : i32 to vector<8x8xi32>
    %38 = arith.cmpi eq, %0, %37 : vector<8x8xi32>
    %39 = vector.broadcast %35 : i32 to vector<8x8xi32>
    %40 = arith.cmpi eq, %1, %39 : vector<8x8xi32>
    %41 = arith.andi %38, %40 : vector<8x8xi1>
    %42 = arith.ori %34, %41 : vector<8x8xi1>
    %c0_15 = arith.constant 0 : index
    %c5 = arith.constant 5 : index
    %43 = memref.load %arg0[%c0_15, %c5] : memref<2x12xi32, #tpu.memory_space<smem>>
    %c1_16 = arith.constant 1 : index
    %c5_17 = arith.constant 5 : index
    %44 = memref.load %arg0[%c1_16, %c5_17] : memref<2x12xi32, #tpu.memory_space<smem>>
    %45 = vector.broadcast %44 : i32 to vector<8x8xi32>
    %46 = arith.cmpi eq, %0, %45 : vector<8x8xi32>
    %47 = vector.broadcast %43 : i32 to vector<8x8xi32>
    %48 = arith.cmpi eq, %1, %47 : vector<8x8xi32>
    %49 = arith.andi %46, %48 : vector<8x8xi1>
    %50 = arith.ori %42, %49 : vector<8x8xi1>
    %c0_18 = arith.constant 0 : index
    %c6 = arith.constant 6 : index
    %51 = memref.load %arg0[%c0_18, %c6] : memref<2x12xi32, #tpu.memory_space<smem>>
    %c1_19 = arith.constant 1 : index
    %c6_20 = arith.constant 6 : index
    %52 = memref.load %arg0[%c1_19, %c6_20] : memref<2x12xi32, #tpu.memory_space<smem>>
    %53 = vector.broadcast %52 : i32 to vector<8x8xi32>
    %54 = arith.cmpi eq, %0, %53 : vector<8x8xi32>
    %55 = vector.broadcast %51 : i32 to vector<8x8xi32>
    %56 = arith.cmpi eq, %1, %55 : vector<8x8xi32>
    %57 = arith.andi %54, %56 : vector<8x8xi1>
    %58 = arith.ori %50, %57 : vector<8x8xi1>
    %c0_21 = arith.constant 0 : index
    %c7 = arith.constant 7 : index
    %59 = memref.load %arg0[%c0_21, %c7] : memref<2x12xi32, #tpu.memory_space<smem>>
    %c1_22 = arith.constant 1 : index
    %c7_23 = arith.constant 7 : index
    %60 = memref.load %arg0[%c1_22, %c7_23] : memref<2x12xi32, #tpu.memory_space<smem>>
    %61 = vector.broadcast %60 : i32 to vector<8x8xi32>
    %62 = arith.cmpi eq, %0, %61 : vector<8x8xi32>
    %63 = vector.broadcast %59 : i32 to vector<8x8xi32>
    %64 = arith.cmpi eq, %1, %63 : vector<8x8xi32>
    %65 = arith.andi %62, %64 : vector<8x8xi1>
    %66 = arith.ori %58, %65 : vector<8x8xi1>
    %c0_24 = arith.constant 0 : index
    %c8 = arith.constant 8 : index
    %67 = memref.load %arg0[%c0_24, %c8] : memref<2x12xi32, #tpu.memory_space<smem>>
    %c1_25 = arith.constant 1 : index
    %c8_26 = arith.constant 8 : index
    %68 = memref.load %arg0[%c1_25, %c8_26] : memref<2x12xi32, #tpu.memory_space<smem>>
    %69 = vector.broadcast %68 : i32 to vector<8x8xi32>
    %70 = arith.cmpi eq, %0, %69 : vector<8x8xi32>
    %71 = vector.broadcast %67 : i32 to vector<8x8xi32>
    %72 = arith.cmpi eq, %1, %71 : vector<8x8xi32>
    %73 = arith.andi %70, %72 : vector<8x8xi1>
    %74 = arith.ori %66, %73 : vector<8x8xi1>
    %c0_27 = arith.constant 0 : index
    %c9 = arith.constant 9 : index
    %75 = memref.load %arg0[%c0_27, %c9] : memref<2x12xi32, #tpu.memory_space<smem>>
    %c1_28 = arith.constant 1 : index
    %c9_29 = arith.constant 9 : index
    %76 = memref.load %arg0[%c1_28, %c9_29] : memref<2x12xi32, #tpu.memory_space<smem>>
    %77 = vector.broadcast %76 : i32 to vector<8x8xi32>
    %78 = arith.cmpi eq, %0, %77 : vector<8x8xi32>
    %79 = vector.broadcast %75 : i32 to vector<8x8xi32>
    %80 = arith.cmpi eq, %1, %79 : vector<8x8xi32>
    %81 = arith.andi %78, %80 : vector<8x8xi1>
    %82 = arith.ori %74, %81 : vector<8x8xi1>
    %c0_30 = arith.constant 0 : index
    %c10 = arith.constant 10 : index
    %83 = memref.load %arg0[%c0_30, %c10] : memref<2x12xi32, #tpu.memory_space<smem>>
    %c1_31 = arith.constant 1 : index
    %c10_32 = arith.constant 10 : index
    %84 = memref.load %arg0[%c1_31, %c10_32] : memref<2x12xi32, #tpu.memory_space<smem>>
    %85 = vector.broadcast %84 : i32 to vector<8x8xi32>
    %86 = arith.cmpi eq, %0, %85 : vector<8x8xi32>
    %87 = vector.broadcast %83 : i32 to vector<8x8xi32>
    %88 = arith.cmpi eq, %1, %87 : vector<8x8xi32>
    %89 = arith.andi %86, %88 : vector<8x8xi1>
    %90 = arith.ori %82, %89 : vector<8x8xi1>
    %c0_33 = arith.constant 0 : index
    %c11 = arith.constant 11 : index
    %91 = memref.load %arg0[%c0_33, %c11] : memref<2x12xi32, #tpu.memory_space<smem>>
    %c1_34 = arith.constant 1 : index
    %c11_35 = arith.constant 11 : index
    %92 = memref.load %arg0[%c1_34, %c11_35] : memref<2x12xi32, #tpu.memory_space<smem>>
    %93 = vector.broadcast %92 : i32 to vector<8x8xi32>
    %94 = arith.cmpi eq, %0, %93 : vector<8x8xi32>
    %95 = vector.broadcast %91 : i32 to vector<8x8xi32>
    %96 = arith.cmpi eq, %1, %95 : vector<8x8xi32>
    %97 = arith.andi %94, %96 : vector<8x8xi1>
    %98 = arith.ori %90, %97 : vector<8x8xi1>
    %c0_36 = arith.constant 0 : index
    %c0_37 = arith.constant 0 : index
    %99 = vector.load %arg1[%c0_36, %c0_37] : memref<8x16xf32, #tpu.memory_space<vmem>>, vector<8x16xf32>
    %c0_38 = arith.constant 0 : index
    %c0_39 = arith.constant 0 : index
    %100 = vector.load %arg2[%c0_38, %c0_39] : memref<16x32xf32, #tpu.memory_space<vmem>>, vector<16x32xf32>
    %cst = arith.constant dense<0.000000e+00> : vector<8x32xf32>
    %101 = tpu.matmul %99, %100, %cst {dimension_numbers = #tpu.dot_dimension_numbers<[1], [0], [0], [1], [0, 0, 1, 1], [], []>} : vector<8x16xf32>, vector<16x32xf32>, vector<8x32xf32> -> vector<8x32xf32>
    %c0_40 = arith.constant 0 : index
    %c0_41 = arith.constant 0 : index
    %102 = vector.load %arg3[%c0_40, %c0_41] : memref<1x32xf32, #tpu.memory_space<vmem>>, vector<1x32xf32>
    %103 = vector.broadcast %102 : vector<1x32xf32> to vector<8x32xf32>
    %104 = arith.addf %101, %103 : vector<8x32xf32>
    %c0_42 = arith.constant 0 : index
    %c0_43 = arith.constant 0 : index
    %105 = vector.load %arg4[%c0_42, %c0_43] : memref<16x32xf32, #tpu.memory_space<vmem>>, vector<16x32xf32>
    %cst_44 = arith.constant dense<0.000000e+00> : vector<8x32xf32>
    %106 = tpu.matmul %99, %105, %cst_44 {dimension_numbers = #tpu.dot_dimension_numbers<[1], [0], [0], [1], [0, 0, 1, 1], [], []>} : vector<8x16xf32>, vector<16x32xf32>, vector<8x32xf32> -> vector<8x32xf32>
    %c0_45 = arith.constant 0 : index
    %c0_46 = arith.constant 0 : index
    %107 = vector.load %arg5[%c0_45, %c0_46] : memref<1x32xf32, #tpu.memory_space<vmem>>, vector<1x32xf32>
    %108 = vector.broadcast %107 : vector<1x32xf32> to vector<8x32xf32>
    %109 = arith.addf %106, %108 : vector<8x32xf32>
    %110 = vector.shape_cast %104 : vector<8x32xf32> to vector<1x8x32xf32>
    %111 = vector.shape_cast %109 : vector<8x32xf32> to vector<8x1x32xf32>
    %112 = vector.broadcast %110 : vector<1x8x32xf32> to vector<8x8x32xf32>
    %113 = vector.broadcast %111 : vector<8x1x32xf32> to vector<8x8x32xf32>
    %114 = arith.addf %112, %113 : vector<8x8x32xf32>
    %cst_47 = arith.constant 0.000000e+00 : f32
    %115 = vector.broadcast %cst_47 : f32 to vector<8x8x32xf32>
    %116 = arith.cmpf oge, %114, %115 : vector<8x8x32xf32>
    %cst_48 = arith.constant 2.000000e-01 : f32
    %117 = vector.broadcast %cst_48 : f32 to vector<8x8x32xf32>
    %118 = arith.mulf %117, %114 : vector<8x8x32xf32>
    %119 = arith.select %116, %114, %118 : vector<8x8x32xi1>, vector<8x8x32xf32>
    %c0_49 = arith.constant 0 : index
    %c0_50 = arith.constant 0 : index
    %120 = vector.load %arg6[%c0_49, %c0_50] : memref<1x32xf32, #tpu.memory_space<vmem>>, vector<1x32xf32>
    %121 = vector.shape_cast %120 : vector<1x32xf32> to vector<1x1x32xf32>
    %122 = vector.broadcast %121 : vector<1x1x32xf32> to vector<8x8x32xf32>
    %123 = arith.mulf %119, %122 : vector<8x8x32xf32>
    %cst_51 = arith.constant dense<0.000000e+00> : vector<8x8xf32>
    %124 = vector.multi_reduction <add>, %123, %cst_51 [2] : vector<8x8x32xf32> to vector<8x8xf32>
    %cst_52 = arith.constant -1.000000e+30 : f32
    %125 = vector.broadcast %cst_52 : f32 to vector<8x8xf32>
    %126 = arith.select %98, %124, %125 : vector<8x8xi1>, vector<8x8xf32>
    %cst_53 = arith.constant dense<0xFF800000> : vector<8xf32>
    %127 = vector.multi_reduction <maximumf>, %126, %cst_53 [1] : vector<8x8xf32> to vector<8xf32>
    %128 = vector.shape_cast %127 : vector<8xf32> to vector<8x1xf32>
    %129 = vector.broadcast %128 : vector<8x1xf32> to vector<8x8xf32>
    %130 = arith.subf %126, %129 : vector<8x8xf32>
    %131 = math.exp %130 : vector<8x8xf32>
    %cst_54 = arith.constant 0.000000e+00 : f32
    %132 = vector.broadcast %cst_54 : f32 to vector<8x8xf32>
    %133 = arith.select %98, %131, %132 : vector<8x8xi1>, vector<8x8xf32>
    %cst_55 = arith.constant dense<0.000000e+00> : vector<8xf32>
    %134 = vector.multi_reduction <add>, %133, %cst_55 [1] : vector<8x8xf32> to vector<8xf32>
    %135 = vector.shape_cast %134 : vector<8xf32> to vector<8x1xf32>
    %136 = vector.broadcast %135 : vector<8x1xf32> to vector<8x8xf32>
    %137 = arith.divf %133, %136 : vector<8x8xf32>
    %cst_56 = arith.constant dense<0.000000e+00> : vector<8x32xf32>
    %138 = tpu.matmul %137, %104, %cst_56 {dimension_numbers = #tpu.dot_dimension_numbers<[1], [0], [0], [1], [0, 0, 1, 1], [], []>} : vector<8x8xf32>, vector<8x32xf32>, vector<8x32xf32> -> vector<8x32xf32>
    %c0_57 = arith.constant 0 : index
    %c0_58 = arith.constant 0 : index
    %139 = vector.load %arg7[%c0_57, %c0_58] : memref<1x32xf32, #tpu.memory_space<vmem>>, vector<1x32xf32>
    %140 = vector.broadcast %139 : vector<1x32xf32> to vector<8x32xf32>
    %141 = arith.addf %138, %140 : vector<8x32xf32>
    %cst_59 = arith.constant 0.000000e+00 : f32
    %142 = vector.broadcast %cst_59 : f32 to vector<8x32xf32>
    %143 = arith.maximumf %141, %142 : vector<8x32xf32>
    %c0_60 = arith.constant 0 : index
    %c0_61 = arith.constant 0 : index
    %144 = vector.load %arg9[%c0_60, %c0_61] : memref<32x32xf32, #tpu.memory_space<vmem>>, vector<32x32xf32>
    %cst_62 = arith.constant dense<0.000000e+00> : vector<8x32xf32>
    %145 = tpu.matmul %143, %144, %cst_62 {dimension_numbers = #tpu.dot_dimension_numbers<[1], [0], [0], [1], [0, 0, 1, 1], [], []>} : vector<8x32xf32>, vector<32x32xf32>, vector<8x32xf32> -> vector<8x32xf32>
    %c0_63 = arith.constant 0 : index
    %c0_64 = arith.constant 0 : index
    %146 = vector.load %arg15[%c0_63, %c0_64] : memref<1x32xf32, #tpu.memory_space<vmem>>, vector<1x32xf32>
    %147 = vector.broadcast %146 : vector<1x32xf32> to vector<8x32xf32>
    %148 = arith.addf %145, %147 : vector<8x32xf32>
    %c0_65 = arith.constant 0 : index
    %c0_66 = arith.constant 0 : index
    %149 = vector.load %arg10[%c0_65, %c0_66] : memref<32x32xf32, #tpu.memory_space<vmem>>, vector<32x32xf32>
    %cst_67 = arith.constant dense<0.000000e+00> : vector<8x32xf32>
    %150 = tpu.matmul %143, %149, %cst_67 {dimension_numbers = #tpu.dot_dimension_numbers<[1], [0], [0], [1], [0, 0, 1, 1], [], []>} : vector<8x32xf32>, vector<32x32xf32>, vector<8x32xf32> -> vector<8x32xf32>
    %c0_68 = arith.constant 0 : index
    %c0_69 = arith.constant 0 : index
    %151 = vector.load %arg16[%c0_68, %c0_69] : memref<1x32xf32, #tpu.memory_space<vmem>>, vector<1x32xf32>
    %152 = vector.broadcast %151 : vector<1x32xf32> to vector<8x32xf32>
    %153 = arith.addf %150, %152 : vector<8x32xf32>
    %c0_70 = arith.constant 0 : index
    %c0_71 = arith.constant 0 : index
    %154 = vector.load %arg11[%c0_70, %c0_71] : memref<32x32xf32, #tpu.memory_space<vmem>>, vector<32x32xf32>
    %cst_72 = arith.constant dense<0.000000e+00> : vector<8x32xf32>
    %155 = tpu.matmul %143, %154, %cst_72 {dimension_numbers = #tpu.dot_dimension_numbers<[1], [0], [0], [1], [0, 0, 1, 1], [], []>} : vector<8x32xf32>, vector<32x32xf32>, vector<8x32xf32> -> vector<8x32xf32>
    %c0_73 = arith.constant 0 : index
    %c0_74 = arith.constant 0 : index
    %156 = vector.load %arg17[%c0_73, %c0_74] : memref<1x32xf32, #tpu.memory_space<vmem>>, vector<1x32xf32>
    %157 = vector.broadcast %156 : vector<1x32xf32> to vector<8x32xf32>
    %158 = arith.addf %155, %157 : vector<8x32xf32>
    %c0_75 = arith.constant 0 : index
    %c0_76 = arith.constant 0 : index
    %159 = vector.load %arg8[%c0_75, %c0_76] : memref<1x32xf32, #tpu.memory_space<vmem>>, vector<1x32xf32>
    %c0_77 = arith.constant 0 : index
    %c0_78 = arith.constant 0 : index
    %160 = vector.load %arg12[%c0_77, %c0_78] : memref<32x32xf32, #tpu.memory_space<vmem>>, vector<32x32xf32>
    %cst_79 = arith.constant dense<0.000000e+00> : vector<1x32xf32>
    %161 = tpu.matmul %159, %160, %cst_79 {dimension_numbers = #tpu.dot_dimension_numbers<[1], [0], [0], [1], [0, 0, 1, 1], [], []>} : vector<1x32xf32>, vector<32x32xf32>, vector<1x32xf32> -> vector<1x32xf32>
    %c0_80 = arith.constant 0 : index
    %c0_81 = arith.constant 0 : index
    %162 = vector.load %arg18[%c0_80, %c0_81] : memref<1x32xf32, #tpu.memory_space<vmem>>, vector<1x32xf32>
    %163 = arith.addf %161, %162 : vector<1x32xf32>
    %c0_82 = arith.constant 0 : index
    %c0_83 = arith.constant 0 : index
    %164 = vector.load %arg13[%c0_82, %c0_83] : memref<32x32xf32, #tpu.memory_space<vmem>>, vector<32x32xf32>
    %cst_84 = arith.constant dense<0.000000e+00> : vector<1x32xf32>
    %165 = tpu.matmul %159, %164, %cst_84 {dimension_numbers = #tpu.dot_dimension_numbers<[1], [0], [0], [1], [0, 0, 1, 1], [], []>} : vector<1x32xf32>, vector<32x32xf32>, vector<1x32xf32> -> vector<1x32xf32>
    %c0_85 = arith.constant 0 : index
    %c0_86 = arith.constant 0 : index
    %166 = vector.load %arg19[%c0_85, %c0_86] : memref<1x32xf32, #tpu.memory_space<vmem>>, vector<1x32xf32>
    %167 = arith.addf %165, %166 : vector<1x32xf32>
    %c0_87 = arith.constant 0 : index
    %c0_88 = arith.constant 0 : index
    %168 = vector.load %arg14[%c0_87, %c0_88] : memref<32x32xf32, #tpu.memory_space<vmem>>, vector<32x32xf32>
    %cst_89 = arith.constant dense<0.000000e+00> : vector<1x32xf32>
    %169 = tpu.matmul %159, %168, %cst_89 {dimension_numbers = #tpu.dot_dimension_numbers<[1], [0], [0], [1], [0, 0, 1, 1], [], []>} : vector<1x32xf32>, vector<32x32xf32>, vector<1x32xf32> -> vector<1x32xf32>
    %c0_90 = arith.constant 0 : index
    %c0_91 = arith.constant 0 : index
    %170 = vector.load %arg20[%c0_90, %c0_91] : memref<1x32xf32, #tpu.memory_space<vmem>>, vector<1x32xf32>
    %171 = arith.addf %169, %170 : vector<1x32xf32>
    %172 = vector.extract_strided_slice %148 {offsets = [0, 0], sizes = [1, 32], strides = [1, 1]} : vector<8x32xf32> to vector<1x32xf32>
    %173 = arith.addf %172, %163 : vector<1x32xf32>
    %174 = arith.negf %173 : vector<1x32xf32>
    %175 = math.exp %174 : vector<1x32xf32>
    %cst_92 = arith.constant 1.000000e+00 : f32
    %176 = vector.broadcast %cst_92 : f32 to vector<1x32xf32>
    %177 = arith.addf %176, %175 : vector<1x32xf32>
    %178 = arith.divf %176, %177 : vector<1x32xf32>
    %179 = vector.extract_strided_slice %153 {offsets = [0, 0], sizes = [1, 32], strides = [1, 1]} : vector<8x32xf32> to vector<1x32xf32>
    %180 = arith.addf %179, %167 : vector<1x32xf32>
    %181 = arith.negf %180 : vector<1x32xf32>
    %182 = math.exp %181 : vector<1x32xf32>
    %cst_93 = arith.constant 1.000000e+00 : f32
    %183 = vector.broadcast %cst_93 : f32 to vector<1x32xf32>
    %184 = arith.addf %183, %182 : vector<1x32xf32>
    %185 = arith.divf %183, %184 : vector<1x32xf32>
    %186 = vector.extract_strided_slice %158 {offsets = [0, 0], sizes = [1, 32], strides = [1, 1]} : vector<8x32xf32> to vector<1x32xf32>
    %187 = arith.mulf %178, %171 : vector<1x32xf32>
    %188 = arith.addf %186, %187 : vector<1x32xf32>
    %189 = math.tanh %188 : vector<1x32xf32>
    %cst_94 = arith.constant 1.000000e+00 : f32
    %190 = vector.broadcast %cst_94 : f32 to vector<1x32xf32>
    %191 = arith.subf %190, %185 : vector<1x32xf32>
    %192 = arith.mulf %191, %189 : vector<1x32xf32>
    %193 = arith.mulf %185, %159 : vector<1x32xf32>
    %194 = arith.addf %192, %193 : vector<1x32xf32>
    %c0_95 = arith.constant 0 : index
    %c0_96 = arith.constant 0 : index
    %195 = vector.load %arg26[%c0_95, %c0_96] : memref<8x32xf32, #tpu.memory_space<vmem>>, vector<1x32xf32>
    tpu.vector_store %arg26[%c0_95, %c0_96], %194 {strides = array<i32>} : memref<8x32xf32, #tpu.memory_space<vmem>>, vector<1x32xf32>,
    %c0_97 = arith.constant 0 : index
    %c0_98 = arith.constant 0 : index
    %196 = vector.load %arg12[%c0_97, %c0_98] : memref<32x32xf32, #tpu.memory_space<vmem>>, vector<32x32xf32>
    %cst_99 = arith.constant dense<0.000000e+00> : vector<1x32xf32>
    %197 = tpu.matmul %194, %196, %cst_99 {dimension_numbers = #tpu.dot_dimension_numbers<[1], [0], [0], [1], [0, 0, 1, 1], [], []>} : vector<1x32xf32>, vector<32x32xf32>, vector<1x32xf32> -> vector<1x32xf32>
    %c0_100 = arith.constant 0 : index
    %c0_101 = arith.constant 0 : index
    %198 = vector.load %arg18[%c0_100, %c0_101] : memref<1x32xf32, #tpu.memory_space<vmem>>, vector<1x32xf32>
    %199 = arith.addf %197, %198 : vector<1x32xf32>
    %c0_102 = arith.constant 0 : index
    %c0_103 = arith.constant 0 : index
    %200 = vector.load %arg13[%c0_102, %c0_103] : memref<32x32xf32, #tpu.memory_space<vmem>>, vector<32x32xf32>
    %cst_104 = arith.constant dense<0.000000e+00> : vector<1x32xf32>
    %201 = tpu.matmul %194, %200, %cst_104 {dimension_numbers = #tpu.dot_dimension_numbers<[1], [0], [0], [1], [0, 0, 1, 1], [], []>} : vector<1x32xf32>, vector<32x32xf32>, vector<1x32xf32> -> vector<1x32xf32>
    %c0_105 = arith.constant 0 : index
    %c0_106 = arith.constant 0 : index
    %202 = vector.load %arg19[%c0_105, %c0_106] : memref<1x32xf32, #tpu.memory_space<vmem>>, vector<1x32xf32>
    %203 = arith.addf %201, %202 : vector<1x32xf32>
    %c0_107 = arith.constant 0 : index
    %c0_108 = arith.constant 0 : index
    %204 = vector.load %arg14[%c0_107, %c0_108] : memref<32x32xf32, #tpu.memory_space<vmem>>, vector<32x32xf32>
    %cst_109 = arith.constant dense<0.000000e+00> : vector<1x32xf32>
    %205 = tpu.matmul %194, %204, %cst_109 {dimension_numbers = #tpu.dot_dimension_numbers<[1], [0], [0], [1], [0, 0, 1, 1], [], []>} : vector<1x32xf32>, vector<32x32xf32>, vector<1x32xf32> -> vector<1x32xf32>
    %c0_110 = arith.constant 0 : index
    %c0_111 = arith.constant 0 : index
    %206 = vector.load %arg20[%c0_110, %c0_111] : memref<1x32xf32, #tpu.memory_space<vmem>>, vector<1x32xf32>
    %207 = arith.addf %205, %206 : vector<1x32xf32>
    %208 = vector.extract_strided_slice %148 {offsets = [1, 0], sizes = [1, 32], strides = [1, 1]} : vector<8x32xf32> to vector<1x32xf32>
    %209 = arith.addf %208, %199 : vector<1x32xf32>
    %210 = arith.negf %209 : vector<1x32xf32>
    %211 = math.exp %210 : vector<1x32xf32>
    %cst_112 = arith.constant 1.000000e+00 : f32
    %212 = vector.broadcast %cst_112 : f32 to vector<1x32xf32>
    %213 = arith.addf %212, %211 : vector<1x32xf32>
    %214 = arith.divf %212, %213 : vector<1x32xf32>
    %215 = vector.extract_strided_slice %153 {offsets = [1, 0], sizes = [1, 32], strides = [1, 1]} : vector<8x32xf32> to vector<1x32xf32>
    %216 = arith.addf %215, %203 : vector<1x32xf32>
    %217 = arith.negf %216 : vector<1x32xf32>
    %218 = math.exp %217 : vector<1x32xf32>
    %cst_113 = arith.constant 1.000000e+00 : f32
    %219 = vector.broadcast %cst_113 : f32 to vector<1x32xf32>
    %220 = arith.addf %219, %218 : vector<1x32xf32>
    %221 = arith.divf %219, %220 : vector<1x32xf32>
    %222 = vector.extract_strided_slice %158 {offsets = [1, 0], sizes = [1, 32], strides = [1, 1]} : vector<8x32xf32> to vector<1x32xf32>
    %223 = arith.mulf %214, %207 : vector<1x32xf32>
    %224 = arith.addf %222, %223 : vector<1x32xf32>
    %225 = math.tanh %224 : vector<1x32xf32>
    %cst_114 = arith.constant 1.000000e+00 : f32
    %226 = vector.broadcast %cst_114 : f32 to vector<1x32xf32>
    %227 = arith.subf %226, %221 : vector<1x32xf32>
    %228 = arith.mulf %227, %225 : vector<1x32xf32>
    %229 = arith.mulf %221, %194 : vector<1x32xf32>
    %230 = arith.addf %228, %229 : vector<1x32xf32>
    %c1_115 = arith.constant 1 : index
    %c0_116 = arith.constant 0 : index
    %231 = vector.load %arg26[%c1_115, %c0_116] : memref<8x32xf32, #tpu.memory_space<vmem>>, vector<1x32xf32>
    tpu.vector_store %arg26[%c1_115, %c0_116], %230 {strides = array<i32>} : memref<8x32xf32, #tpu.memory_space<vmem>>, vector<1x32xf32>,
    %c0_117 = arith.constant 0 : index
    %c0_118 = arith.constant 0 : index
    %232 = vector.load %arg12[%c0_117, %c0_118] : memref<32x32xf32, #tpu.memory_space<vmem>>, vector<32x32xf32>
    %cst_119 = arith.constant dense<0.000000e+00> : vector<1x32xf32>
    %233 = tpu.matmul %230, %232, %cst_119 {dimension_numbers = #tpu.dot_dimension_numbers<[1], [0], [0], [1], [0, 0, 1, 1], [], []>} : vector<1x32xf32>, vector<32x32xf32>, vector<1x32xf32> -> vector<1x32xf32>
    %c0_120 = arith.constant 0 : index
    %c0_121 = arith.constant 0 : index
    %234 = vector.load %arg18[%c0_120, %c0_121] : memref<1x32xf32, #tpu.memory_space<vmem>>, vector<1x32xf32>
    %235 = arith.addf %233, %234 : vector<1x32xf32>
    %c0_122 = arith.constant 0 : index
    %c0_123 = arith.constant 0 : index
    %236 = vector.load %arg13[%c0_122, %c0_123] : memref<32x32xf32, #tpu.memory_space<vmem>>, vector<32x32xf32>
    %cst_124 = arith.constant dense<0.000000e+00> : vector<1x32xf32>
    %237 = tpu.matmul %230, %236, %cst_124 {dimension_numbers = #tpu.dot_dimension_numbers<[1], [0], [0], [1], [0, 0, 1, 1], [], []>} : vector<1x32xf32>, vector<32x32xf32>, vector<1x32xf32> -> vector<1x32xf32>
    %c0_125 = arith.constant 0 : index
    %c0_126 = arith.constant 0 : index
    %238 = vector.load %arg19[%c0_125, %c0_126] : memref<1x32xf32, #tpu.memory_space<vmem>>, vector<1x32xf32>
    %239 = arith.addf %237, %238 : vector<1x32xf32>
    %c0_127 = arith.constant 0 : index
    %c0_128 = arith.constant 0 : index
    %240 = vector.load %arg14[%c0_127, %c0_128] : memref<32x32xf32, #tpu.memory_space<vmem>>, vector<32x32xf32>
    %cst_129 = arith.constant dense<0.000000e+00> : vector<1x32xf32>
    %241 = tpu.matmul %230, %240, %cst_129 {dimension_numbers = #tpu.dot_dimension_numbers<[1], [0], [0], [1], [0, 0, 1, 1], [], []>} : vector<1x32xf32>, vector<32x32xf32>, vector<1x32xf32> -> vector<1x32xf32>
    %c0_130 = arith.constant 0 : index
    %c0_131 = arith.constant 0 : index
    %242 = vector.load %arg20[%c0_130, %c0_131] : memref<1x32xf32, #tpu.memory_space<vmem>>, vector<1x32xf32>
    %243 = arith.addf %241, %242 : vector<1x32xf32>
    %244 = vector.extract_strided_slice %148 {offsets = [2, 0], sizes = [1, 32], strides = [1, 1]} : vector<8x32xf32> to vector<1x32xf32>
    %245 = arith.addf %244, %235 : vector<1x32xf32>
    %246 = arith.negf %245 : vector<1x32xf32>
    %247 = math.exp %246 : vector<1x32xf32>
    %cst_132 = arith.constant 1.000000e+00 : f32
    %248 = vector.broadcast %cst_132 : f32 to vector<1x32xf32>
    %249 = arith.addf %248, %247 : vector<1x32xf32>
    %250 = arith.divf %248, %249 : vector<1x32xf32>
    %251 = vector.extract_strided_slice %153 {offsets = [2, 0], sizes = [1, 32], strides = [1, 1]} : vector<8x32xf32> to vector<1x32xf32>
    %252 = arith.addf %251, %239 : vector<1x32xf32>
    %253 = arith.negf %252 : vector<1x32xf32>
    %254 = math.exp %253 : vector<1x32xf32>
    %cst_133 = arith.constant 1.000000e+00 : f32
    %255 = vector.broadcast %cst_133 : f32 to vector<1x32xf32>
    %256 = arith.addf %255, %254 : vector<1x32xf32>
    %257 = arith.divf %255, %256 : vector<1x32xf32>
    %258 = vector.extract_strided_slice %158 {offsets = [2, 0], sizes = [1, 32], strides = [1, 1]} : vector<8x32xf32> to vector<1x32xf32>
    %259 = arith.mulf %250, %243 : vector<1x32xf32>
    %260 = arith.addf %258, %259 : vector<1x32xf32>
    %261 = math.tanh %260 : vector<1x32xf32>
    %cst_134 = arith.constant 1.000000e+00 : f32
    %262 = vector.broadcast %cst_134 : f32 to vector<1x32xf32>
    %263 = arith.subf %262, %257 : vector<1x32xf32>
    %264 = arith.mulf %263, %261 : vector<1x32xf32>
    %265 = arith.mulf %257, %230 : vector<1x32xf32>
    %266 = arith.addf %264, %265 : vector<1x32xf32>
    %c2_135 = arith.constant 2 : index
    %c0_136 = arith.constant 0 : index
    %267 = vector.load %arg26[%c2_135, %c0_136] : memref<8x32xf32, #tpu.memory_space<vmem>>, vector<1x32xf32>
    tpu.vector_store %arg26[%c2_135, %c0_136], %266 {strides = array<i32>} : memref<8x32xf32, #tpu.memory_space<vmem>>, vector<1x32xf32>,
    %c0_137 = arith.constant 0 : index
    %c0_138 = arith.constant 0 : index
    %268 = vector.load %arg12[%c0_137, %c0_138] : memref<32x32xf32, #tpu.memory_space<vmem>>, vector<32x32xf32>
    %cst_139 = arith.constant dense<0.000000e+00> : vector<1x32xf32>
    %269 = tpu.matmul %266, %268, %cst_139 {dimension_numbers = #tpu.dot_dimension_numbers<[1], [0], [0], [1], [0, 0, 1, 1], [], []>} : vector<1x32xf32>, vector<32x32xf32>, vector<1x32xf32> -> vector<1x32xf32>
    %c0_140 = arith.constant 0 : index
    %c0_141 = arith.constant 0 : index
    %270 = vector.load %arg18[%c0_140, %c0_141] : memref<1x32xf32, #tpu.memory_space<vmem>>, vector<1x32xf32>
    %271 = arith.addf %269, %270 : vector<1x32xf32>
    %c0_142 = arith.constant 0 : index
    %c0_143 = arith.constant 0 : index
    %272 = vector.load %arg13[%c0_142, %c0_143] : memref<32x32xf32, #tpu.memory_space<vmem>>, vector<32x32xf32>
    %cst_144 = arith.constant dense<0.000000e+00> : vector<1x32xf32>
    %273 = tpu.matmul %266, %272, %cst_144 {dimension_numbers = #tpu.dot_dimension_numbers<[1], [0], [0], [1], [0, 0, 1, 1], [], []>} : vector<1x32xf32>, vector<32x32xf32>, vector<1x32xf32> -> vector<1x32xf32>
    %c0_145 = arith.constant 0 : index
    %c0_146 = arith.constant 0 : index
    %274 = vector.load %arg19[%c0_145, %c0_146] : memref<1x32xf32, #tpu.memory_space<vmem>>, vector<1x32xf32>
    %275 = arith.addf %273, %274 : vector<1x32xf32>
    %c0_147 = arith.constant 0 : index
    %c0_148 = arith.constant 0 : index
    %276 = vector.load %arg14[%c0_147, %c0_148] : memref<32x32xf32, #tpu.memory_space<vmem>>, vector<32x32xf32>
    %cst_149 = arith.constant dense<0.000000e+00> : vector<1x32xf32>
    %277 = tpu.matmul %266, %276, %cst_149 {dimension_numbers = #tpu.dot_dimension_numbers<[1], [0], [0], [1], [0, 0, 1, 1], [], []>} : vector<1x32xf32>, vector<32x32xf32>, vector<1x32xf32> -> vector<1x32xf32>
    %c0_150 = arith.constant 0 : index
    %c0_151 = arith.constant 0 : index
    %278 = vector.load %arg20[%c0_150, %c0_151] : memref<1x32xf32, #tpu.memory_space<vmem>>, vector<1x32xf32>
    %279 = arith.addf %277, %278 : vector<1x32xf32>
    %280 = vector.extract_strided_slice %148 {offsets = [3, 0], sizes = [1, 32], strides = [1, 1]} : vector<8x32xf32> to vector<1x32xf32>
    %281 = arith.addf %280, %271 : vector<1x32xf32>
    %282 = arith.negf %281 : vector<1x32xf32>
    %283 = math.exp %282 : vector<1x32xf32>
    %cst_152 = arith.constant 1.000000e+00 : f32
    %284 = vector.broadcast %cst_152 : f32 to vector<1x32xf32>
    %285 = arith.addf %284, %283 : vector<1x32xf32>
    %286 = arith.divf %284, %285 : vector<1x32xf32>
    %287 = vector.extract_strided_slice %153 {offsets = [3, 0], sizes = [1, 32], strides = [1, 1]} : vector<8x32xf32> to vector<1x32xf32>
    %288 = arith.addf %287, %275 : vector<1x32xf32>
    %289 = arith.negf %288 : vector<1x32xf32>
    %290 = math.exp %289 : vector<1x32xf32>
    %cst_153 = arith.constant 1.000000e+00 : f32
    %291 = vector.broadcast %cst_153 : f32 to vector<1x32xf32>
    %292 = arith.addf %291, %290 : vector<1x32xf32>
    %293 = arith.divf %291, %292 : vector<1x32xf32>
    %294 = vector.extract_strided_slice %158 {offsets = [3, 0], sizes = [1, 32], strides = [1, 1]} : vector<8x32xf32> to vector<1x32xf32>
    %295 = arith.mulf %286, %279 : vector<1x32xf32>
    %296 = arith.addf %294, %295 : vector<1x32xf32>
    %297 = math.tanh %296 : vector<1x32xf32>
    %cst_154 = arith.constant 1.000000e+00 : f32
    %298 = vector.broadcast %cst_154 : f32 to vector<1x32xf32>
    %299 = arith.subf %298, %293 : vector<1x32xf32>
    %300 = arith.mulf %299, %297 : vector<1x32xf32>
    %301 = arith.mulf %293, %266 : vector<1x32xf32>
    %302 = arith.addf %300, %301 : vector<1x32xf32>
    %c3_155 = arith.constant 3 : index
    %c0_156 = arith.constant 0 : index
    %303 = vector.load %arg26[%c3_155, %c0_156] : memref<8x32xf32, #tpu.memory_space<vmem>>, vector<1x32xf32>
    tpu.vector_store %arg26[%c3_155, %c0_156], %302 {strides = array<i32>} : memref<8x32xf32, #tpu.memory_space<vmem>>, vector<1x32xf32>,
    %c0_157 = arith.constant 0 : index
    %c0_158 = arith.constant 0 : index
    %304 = vector.load %arg12[%c0_157, %c0_158] : memref<32x32xf32, #tpu.memory_space<vmem>>, vector<32x32xf32>
    %cst_159 = arith.constant dense<0.000000e+00> : vector<1x32xf32>
    %305 = tpu.matmul %302, %304, %cst_159 {dimension_numbers = #tpu.dot_dimension_numbers<[1], [0], [0], [1], [0, 0, 1, 1], [], []>} : vector<1x32xf32>, vector<32x32xf32>, vector<1x32xf32> -> vector<1x32xf32>
    %c0_160 = arith.constant 0 : index
    %c0_161 = arith.constant 0 : index
    %306 = vector.load %arg18[%c0_160, %c0_161] : memref<1x32xf32, #tpu.memory_space<vmem>>, vector<1x32xf32>
    %307 = arith.addf %305, %306 : vector<1x32xf32>
    %c0_162 = arith.constant 0 : index
    %c0_163 = arith.constant 0 : index
    %308 = vector.load %arg13[%c0_162, %c0_163] : memref<32x32xf32, #tpu.memory_space<vmem>>, vector<32x32xf32>
    %cst_164 = arith.constant dense<0.000000e+00> : vector<1x32xf32>
    %309 = tpu.matmul %302, %308, %cst_164 {dimension_numbers = #tpu.dot_dimension_numbers<[1], [0], [0], [1], [0, 0, 1, 1], [], []>} : vector<1x32xf32>, vector<32x32xf32>, vector<1x32xf32> -> vector<1x32xf32>
    %c0_165 = arith.constant 0 : index
    %c0_166 = arith.constant 0 : index
    %310 = vector.load %arg19[%c0_165, %c0_166] : memref<1x32xf32, #tpu.memory_space<vmem>>, vector<1x32xf32>
    %311 = arith.addf %309, %310 : vector<1x32xf32>
    %c0_167 = arith.constant 0 : index
    %c0_168 = arith.constant 0 : index
    %312 = vector.load %arg14[%c0_167, %c0_168] : memref<32x32xf32, #tpu.memory_space<vmem>>, vector<32x32xf32>
    %cst_169 = arith.constant dense<0.000000e+00> : vector<1x32xf32>
    %313 = tpu.matmul %302, %312, %cst_169 {dimension_numbers = #tpu.dot_dimension_numbers<[1], [0], [0], [1], [0, 0, 1, 1], [], []>} : vector<1x32xf32>, vector<32x32xf32>, vector<1x32xf32> -> vector<1x32xf32>
    %c0_170 = arith.constant 0 : index
    %c0_171 = arith.constant 0 : index
    %314 = vector.load %arg20[%c0_170, %c0_171] : memref<1x32xf32, #tpu.memory_space<vmem>>, vector<1x32xf32>
    %315 = arith.addf %313, %314 : vector<1x32xf32>
    %316 = vector.extract_strided_slice %148 {offsets = [4, 0], sizes = [1, 32], strides = [1, 1]} : vector<8x32xf32> to vector<1x32xf32>
    %317 = arith.addf %316, %307 : vector<1x32xf32>
    %318 = arith.negf %317 : vector<1x32xf32>
    %319 = math.exp %318 : vector<1x32xf32>
    %cst_172 = arith.constant 1.000000e+00 : f32
    %320 = vector.broadcast %cst_172 : f32 to vector<1x32xf32>
    %321 = arith.addf %320, %319 : vector<1x32xf32>
    %322 = arith.divf %320, %321 : vector<1x32xf32>
    %323 = vector.extract_strided_slice %153 {offsets = [4, 0], sizes = [1, 32], strides = [1, 1]} : vector<8x32xf32> to vector<1x32xf32>
    %324 = arith.addf %323, %311 : vector<1x32xf32>
    %325 = arith.negf %324 : vector<1x32xf32>
    %326 = math.exp %325 : vector<1x32xf32>
    %cst_173 = arith.constant 1.000000e+00 : f32
    %327 = vector.broadcast %cst_173 : f32 to vector<1x32xf32>
    %328 = arith.addf %327, %326 : vector<1x32xf32>
    %329 = arith.divf %327, %328 : vector<1x32xf32>
    %330 = vector.extract_strided_slice %158 {offsets = [4, 0], sizes = [1, 32], strides = [1, 1]} : vector<8x32xf32> to vector<1x32xf32>
    %331 = arith.mulf %322, %315 : vector<1x32xf32>
    %332 = arith.addf %330, %331 : vector<1x32xf32>
    %333 = math.tanh %332 : vector<1x32xf32>
    %cst_174 = arith.constant 1.000000e+00 : f32
    %334 = vector.broadcast %cst_174 : f32 to vector<1x32xf32>
    %335 = arith.subf %334, %329 : vector<1x32xf32>
    %336 = arith.mulf %335, %333 : vector<1x32xf32>
    %337 = arith.mulf %329, %302 : vector<1x32xf32>
    %338 = arith.addf %336, %337 : vector<1x32xf32>
    %c4_175 = arith.constant 4 : index
    %c0_176 = arith.constant 0 : index
    %339 = vector.load %arg26[%c4_175, %c0_176] : memref<8x32xf32, #tpu.memory_space<vmem>>, vector<1x32xf32>
    tpu.vector_store %arg26[%c4_175, %c0_176], %338 {strides = array<i32>} : memref<8x32xf32, #tpu.memory_space<vmem>>, vector<1x32xf32>,
    %c0_177 = arith.constant 0 : index
    %c0_178 = arith.constant 0 : index
    %340 = vector.load %arg12[%c0_177, %c0_178] : memref<32x32xf32, #tpu.memory_space<vmem>>, vector<32x32xf32>
    %cst_179 = arith.constant dense<0.000000e+00> : vector<1x32xf32>
    %341 = tpu.matmul %338, %340, %cst_179 {dimension_numbers = #tpu.dot_dimension_numbers<[1], [0], [0], [1], [0, 0, 1, 1], [], []>} : vector<1x32xf32>, vector<32x32xf32>, vector<1x32xf32> -> vector<1x32xf32>
    %c0_180 = arith.constant 0 : index
    %c0_181 = arith.constant 0 : index
    %342 = vector.load %arg18[%c0_180, %c0_181] : memref<1x32xf32, #tpu.memory_space<vmem>>, vector<1x32xf32>
    %343 = arith.addf %341, %342 : vector<1x32xf32>
    %c0_182 = arith.constant 0 : index
    %c0_183 = arith.constant 0 : index
    %344 = vector.load %arg13[%c0_182, %c0_183] : memref<32x32xf32, #tpu.memory_space<vmem>>, vector<32x32xf32>
    %cst_184 = arith.constant dense<0.000000e+00> : vector<1x32xf32>
    %345 = tpu.matmul %338, %344, %cst_184 {dimension_numbers = #tpu.dot_dimension_numbers<[1], [0], [0], [1], [0, 0, 1, 1], [], []>} : vector<1x32xf32>, vector<32x32xf32>, vector<1x32xf32> -> vector<1x32xf32>
    %c0_185 = arith.constant 0 : index
    %c0_186 = arith.constant 0 : index
    %346 = vector.load %arg19[%c0_185, %c0_186] : memref<1x32xf32, #tpu.memory_space<vmem>>, vector<1x32xf32>
    %347 = arith.addf %345, %346 : vector<1x32xf32>
    %c0_187 = arith.constant 0 : index
    %c0_188 = arith.constant 0 : index
    %348 = vector.load %arg14[%c0_187, %c0_188] : memref<32x32xf32, #tpu.memory_space<vmem>>, vector<32x32xf32>
    %cst_189 = arith.constant dense<0.000000e+00> : vector<1x32xf32>
    %349 = tpu.matmul %338, %348, %cst_189 {dimension_numbers = #tpu.dot_dimension_numbers<[1], [0], [0], [1], [0, 0, 1, 1], [], []>} : vector<1x32xf32>, vector<32x32xf32>, vector<1x32xf32> -> vector<1x32xf32>
    %c0_190 = arith.constant 0 : index
    %c0_191 = arith.constant 0 : index
    %350 = vector.load %arg20[%c0_190, %c0_191] : memref<1x32xf32, #tpu.memory_space<vmem>>, vector<1x32xf32>
    %351 = arith.addf %349, %350 : vector<1x32xf32>
    %352 = vector.extract_strided_slice %148 {offsets = [5, 0], sizes = [1, 32], strides = [1, 1]} : vector<8x32xf32> to vector<1x32xf32>
    %353 = arith.addf %352, %343 : vector<1x32xf32>
    %354 = arith.negf %353 : vector<1x32xf32>
    %355 = math.exp %354 : vector<1x32xf32>
    %cst_192 = arith.constant 1.000000e+00 : f32
    %356 = vector.broadcast %cst_192 : f32 to vector<1x32xf32>
    %357 = arith.addf %356, %355 : vector<1x32xf32>
    %358 = arith.divf %356, %357 : vector<1x32xf32>
    %359 = vector.extract_strided_slice %153 {offsets = [5, 0], sizes = [1, 32], strides = [1, 1]} : vector<8x32xf32> to vector<1x32xf32>
    %360 = arith.addf %359, %347 : vector<1x32xf32>
    %361 = arith.negf %360 : vector<1x32xf32>
    %362 = math.exp %361 : vector<1x32xf32>
    %cst_193 = arith.constant 1.000000e+00 : f32
    %363 = vector.broadcast %cst_193 : f32 to vector<1x32xf32>
    %364 = arith.addf %363, %362 : vector<1x32xf32>
    %365 = arith.divf %363, %364 : vector<1x32xf32>
    %366 = vector.extract_strided_slice %158 {offsets = [5, 0], sizes = [1, 32], strides = [1, 1]} : vector<8x32xf32> to vector<1x32xf32>
    %367 = arith.mulf %358, %351 : vector<1x32xf32>
    %368 = arith.addf %366, %367 : vector<1x32xf32>
    %369 = math.tanh %368 : vector<1x32xf32>
    %cst_194 = arith.constant 1.000000e+00 : f32
    %370 = vector.broadcast %cst_194 : f32 to vector<1x32xf32>
    %371 = arith.subf %370, %365 : vector<1x32xf32>
    %372 = arith.mulf %371, %369 : vector<1x32xf32>
    %373 = arith.mulf %365, %338 : vector<1x32xf32>
    %374 = arith.addf %372, %373 : vector<1x32xf32>
    %c5_195 = arith.constant 5 : index
    %c0_196 = arith.constant 0 : index
    %375 = vector.load %arg26[%c5_195, %c0_196] : memref<8x32xf32, #tpu.memory_space<vmem>>, vector<1x32xf32>
    tpu.vector_store %arg26[%c5_195, %c0_196], %374 {strides = array<i32>} : memref<8x32xf32, #tpu.memory_space<vmem>>, vector<1x32xf32>,
    %c0_197 = arith.constant 0 : index
    %c0_198 = arith.constant 0 : index
    %376 = vector.load %arg12[%c0_197, %c0_198] : memref<32x32xf32, #tpu.memory_space<vmem>>, vector<32x32xf32>
    %cst_199 = arith.constant dense<0.000000e+00> : vector<1x32xf32>
    %377 = tpu.matmul %374, %376, %cst_199 {dimension_numbers = #tpu.dot_dimension_numbers<[1], [0], [0], [1], [0, 0, 1, 1], [], []>} : vector<1x32xf32>, vector<32x32xf32>, vector<1x32xf32> -> vector<1x32xf32>
    %c0_200 = arith.constant 0 : index
    %c0_201 = arith.constant 0 : index
    %378 = vector.load %arg18[%c0_200, %c0_201] : memref<1x32xf32, #tpu.memory_space<vmem>>, vector<1x32xf32>
    %379 = arith.addf %377, %378 : vector<1x32xf32>
    %c0_202 = arith.constant 0 : index
    %c0_203 = arith.constant 0 : index
    %380 = vector.load %arg13[%c0_202, %c0_203] : memref<32x32xf32, #tpu.memory_space<vmem>>, vector<32x32xf32>
    %cst_204 = arith.constant dense<0.000000e+00> : vector<1x32xf32>
    %381 = tpu.matmul %374, %380, %cst_204 {dimension_numbers = #tpu.dot_dimension_numbers<[1], [0], [0], [1], [0, 0, 1, 1], [], []>} : vector<1x32xf32>, vector<32x32xf32>, vector<1x32xf32> -> vector<1x32xf32>
    %c0_205 = arith.constant 0 : index
    %c0_206 = arith.constant 0 : index
    %382 = vector.load %arg19[%c0_205, %c0_206] : memref<1x32xf32, #tpu.memory_space<vmem>>, vector<1x32xf32>
    %383 = arith.addf %381, %382 : vector<1x32xf32>
    %c0_207 = arith.constant 0 : index
    %c0_208 = arith.constant 0 : index
    %384 = vector.load %arg14[%c0_207, %c0_208] : memref<32x32xf32, #tpu.memory_space<vmem>>, vector<32x32xf32>
    %cst_209 = arith.constant dense<0.000000e+00> : vector<1x32xf32>
    %385 = tpu.matmul %374, %384, %cst_209 {dimension_numbers = #tpu.dot_dimension_numbers<[1], [0], [0], [1], [0, 0, 1, 1], [], []>} : vector<1x32xf32>, vector<32x32xf32>, vector<1x32xf32> -> vector<1x32xf32>
    %c0_210 = arith.constant 0 : index
    %c0_211 = arith.constant 0 : index
    %386 = vector.load %arg20[%c0_210, %c0_211] : memref<1x32xf32, #tpu.memory_space<vmem>>, vector<1x32xf32>
    %387 = arith.addf %385, %386 : vector<1x32xf32>
    %388 = vector.extract_strided_slice %148 {offsets = [6, 0], sizes = [1, 32], strides = [1, 1]} : vector<8x32xf32> to vector<1x32xf32>
    %389 = arith.addf %388, %379 : vector<1x32xf32>
    %390 = arith.negf %389 : vector<1x32xf32>
    %391 = math.exp %390 : vector<1x32xf32>
    %cst_212 = arith.constant 1.000000e+00 : f32
    %392 = vector.broadcast %cst_212 : f32 to vector<1x32xf32>
    %393 = arith.addf %392, %391 : vector<1x32xf32>
    %394 = arith.divf %392, %393 : vector<1x32xf32>
    %395 = vector.extract_strided_slice %153 {offsets = [6, 0], sizes = [1, 32], strides = [1, 1]} : vector<8x32xf32> to vector<1x32xf32>
    %396 = arith.addf %395, %383 : vector<1x32xf32>
    %397 = arith.negf %396 : vector<1x32xf32>
    %398 = math.exp %397 : vector<1x32xf32>
    %cst_213 = arith.constant 1.000000e+00 : f32
    %399 = vector.broadcast %cst_213 : f32 to vector<1x32xf32>
    %400 = arith.addf %399, %398 : vector<1x32xf32>
    %401 = arith.divf %399, %400 : vector<1x32xf32>
    %402 = vector.extract_strided_slice %158 {offsets = [6, 0], sizes = [1, 32], strides = [1, 1]} : vector<8x32xf32> to vector<1x32xf32>
    %403 = arith.mulf %394, %387 : vector<1x32xf32>
    %404 = arith.addf %402, %403 : vector<1x32xf32>
    %405 = math.tanh %404 : vector<1x32xf32>
    %cst_214 = arith.constant 1.000000e+00 : f32
    %406 = vector.broadcast %cst_214 : f32 to vector<1x32xf32>
    %407 = arith.subf %406, %401 : vector<1x32xf32>
    %408 = arith.mulf %407, %405 : vector<1x32xf32>
    %409 = arith.mulf %401, %374 : vector<1x32xf32>
    %410 = arith.addf %408, %409 : vector<1x32xf32>
    %c6_215 = arith.constant 6 : index
    %c0_216 = arith.constant 0 : index
    %411 = vector.load %arg26[%c6_215, %c0_216] : memref<8x32xf32, #tpu.memory_space<vmem>>, vector<1x32xf32>
    tpu.vector_store %arg26[%c6_215, %c0_216], %410 {strides = array<i32>} : memref<8x32xf32, #tpu.memory_space<vmem>>, vector<1x32xf32>,
    %c0_217 = arith.constant 0 : index
    %c0_218 = arith.constant 0 : index
    %412 = vector.load %arg12[%c0_217, %c0_218] : memref<32x32xf32, #tpu.memory_space<vmem>>, vector<32x32xf32>
    %cst_219 = arith.constant dense<0.000000e+00> : vector<1x32xf32>
    %413 = tpu.matmul %410, %412, %cst_219 {dimension_numbers = #tpu.dot_dimension_numbers<[1], [0], [0], [1], [0, 0, 1, 1], [], []>} : vector<1x32xf32>, vector<32x32xf32>, vector<1x32xf32> -> vector<1x32xf32>
    %c0_220 = arith.constant 0 : index
    %c0_221 = arith.constant 0 : index
    %414 = vector.load %arg18[%c0_220, %c0_221] : memref<1x32xf32, #tpu.memory_space<vmem>>, vector<1x32xf32>
    %415 = arith.addf %413, %414 : vector<1x32xf32>
    %c0_222 = arith.constant 0 : index
    %c0_223 = arith.constant 0 : index
    %416 = vector.load %arg13[%c0_222, %c0_223] : memref<32x32xf32, #tpu.memory_space<vmem>>, vector<32x32xf32>
    %cst_224 = arith.constant dense<0.000000e+00> : vector<1x32xf32>
    %417 = tpu.matmul %410, %416, %cst_224 {dimension_numbers = #tpu.dot_dimension_numbers<[1], [0], [0], [1], [0, 0, 1, 1], [], []>} : vector<1x32xf32>, vector<32x32xf32>, vector<1x32xf32> -> vector<1x32xf32>
    %c0_225 = arith.constant 0 : index
    %c0_226 = arith.constant 0 : index
    %418 = vector.load %arg19[%c0_225, %c0_226] : memref<1x32xf32, #tpu.memory_space<vmem>>, vector<1x32xf32>
    %419 = arith.addf %417, %418 : vector<1x32xf32>
    %c0_227 = arith.constant 0 : index
    %c0_228 = arith.constant 0 : index
    %420 = vector.load %arg14[%c0_227, %c0_228] : memref<32x32xf32, #tpu.memory_space<vmem>>, vector<32x32xf32>
    %cst_229 = arith.constant dense<0.000000e+00> : vector<1x32xf32>
    %421 = tpu.matmul %410, %420, %cst_229 {dimension_numbers = #tpu.dot_dimension_numbers<[1], [0], [0], [1], [0, 0, 1, 1], [], []>} : vector<1x32xf32>, vector<32x32xf32>, vector<1x32xf32> -> vector<1x32xf32>
    %c0_230 = arith.constant 0 : index
    %c0_231 = arith.constant 0 : index
    %422 = vector.load %arg20[%c0_230, %c0_231] : memref<1x32xf32, #tpu.memory_space<vmem>>, vector<1x32xf32>
    %423 = arith.addf %421, %422 : vector<1x32xf32>
    %424 = vector.extract_strided_slice %148 {offsets = [7, 0], sizes = [1, 32], strides = [1, 1]} : vector<8x32xf32> to vector<1x32xf32>
    %425 = arith.addf %424, %415 : vector<1x32xf32>
    %426 = arith.negf %425 : vector<1x32xf32>
    %427 = math.exp %426 : vector<1x32xf32>
    %cst_232 = arith.constant 1.000000e+00 : f32
    %428 = vector.broadcast %cst_232 : f32 to vector<1x32xf32>
    %429 = arith.addf %428, %427 : vector<1x32xf32>
    %430 = arith.divf %428, %429 : vector<1x32xf32>
    %431 = vector.extract_strided_slice %153 {offsets = [7, 0], sizes = [1, 32], strides = [1, 1]} : vector<8x32xf32> to vector<1x32xf32>
    %432 = arith.addf %431, %419 : vector<1x32xf32>
    %433 = arith.negf %432 : vector<1x32xf32>
    %434 = math.exp %433 : vector<1x32xf32>
    %cst_233 = arith.constant 1.000000e+00 : f32
    %435 = vector.broadcast %cst_233 : f32 to vector<1x32xf32>
    %436 = arith.addf %435, %434 : vector<1x32xf32>
    %437 = arith.divf %435, %436 : vector<1x32xf32>
    %438 = vector.extract_strided_slice %158 {offsets = [7, 0], sizes = [1, 32], strides = [1, 1]} : vector<8x32xf32> to vector<1x32xf32>
    %439 = arith.mulf %430, %423 : vector<1x32xf32>
    %440 = arith.addf %438, %439 : vector<1x32xf32>
    %441 = math.tanh %440 : vector<1x32xf32>
    %cst_234 = arith.constant 1.000000e+00 : f32
    %442 = vector.broadcast %cst_234 : f32 to vector<1x32xf32>
    %443 = arith.subf %442, %437 : vector<1x32xf32>
    %444 = arith.mulf %443, %441 : vector<1x32xf32>
    %445 = arith.mulf %437, %410 : vector<1x32xf32>
    %446 = arith.addf %444, %445 : vector<1x32xf32>
    %c7_235 = arith.constant 7 : index
    %c0_236 = arith.constant 0 : index
    %447 = vector.load %arg26[%c7_235, %c0_236] : memref<8x32xf32, #tpu.memory_space<vmem>>, vector<1x32xf32>
    tpu.vector_store %arg26[%c7_235, %c0_236], %446 {strides = array<i32>} : memref<8x32xf32, #tpu.memory_space<vmem>>, vector<1x32xf32>,
    %c0_237 = arith.constant 0 : index
    %c0_238 = arith.constant 0 : index
    %448 = vector.load %arg26[%c0_237, %c0_238] : memref<8x32xf32, #tpu.memory_space<vmem>>, vector<8x32xf32>
    %c0_239 = arith.constant 0 : index
    %c0_240 = arith.constant 0 : index
    %449 = vector.load %arg21[%c0_239, %c0_240] : memref<32x32xf32, #tpu.memory_space<vmem>>, vector<32x32xf32>
    %cst_241 = arith.constant dense<0.000000e+00> : vector<8x32xf32>
    %450 = tpu.matmul %448, %449, %cst_241 {dimension_numbers = #tpu.dot_dimension_numbers<[1], [0], [0], [1], [0, 0, 1, 1], [], []>} : vector<8x32xf32>, vector<32x32xf32>, vector<8x32xf32> -> vector<8x32xf32>
    %c0_242 = arith.constant 0 : index
    %c0_243 = arith.constant 0 : index
    %451 = vector.load %arg22[%c0_242, %c0_243] : memref<1x32xf32, #tpu.memory_space<vmem>>, vector<1x32xf32>
    %452 = vector.broadcast %451 : vector<1x32xf32> to vector<8x32xf32>
    %453 = arith.addf %450, %452 : vector<8x32xf32>
    %cst_244 = arith.constant 0.000000e+00 : f32
    %454 = vector.broadcast %cst_244 : f32 to vector<8x32xf32>
    %455 = arith.maximumf %453, %454 : vector<8x32xf32>
    %c0_245 = arith.constant 0 : index
    %c0_246 = arith.constant 0 : index
    %456 = vector.load %arg23[%c0_245, %c0_246] : memref<32x128xf32, #tpu.memory_space<vmem>>, vector<32x128xf32>
    %cst_247 = arith.constant dense<0.000000e+00> : vector<8x128xf32>
    %457 = tpu.matmul %455, %456, %cst_247 {dimension_numbers = #tpu.dot_dimension_numbers<[1], [0], [0], [1], [0, 0, 1, 1], [], []>} : vector<8x32xf32>, vector<32x128xf32>, vector<8x128xf32> -> vector<8x128xf32>
    %c0_248 = arith.constant 0 : index
    %c0_249 = arith.constant 0 : index
    %458 = vector.load %arg24[%c0_248, %c0_249] : memref<1x128xf32, #tpu.memory_space<vmem>>, vector<1x128xf32>
    %459 = vector.broadcast %458 : vector<1x128xf32> to vector<8x128xf32>
    %460 = arith.addf %457, %459 : vector<8x128xf32>
    %c0_250 = arith.constant 0 : index
    %c0_251 = arith.constant 0 : index
    %461 = vector.load %arg25[%c0_250, %c0_251] : memref<8x128xf32, #tpu.memory_space<vmem>>, vector<8x128xf32>
    tpu.vector_store %arg25[%c0_250, %c0_251], %460 {strides = array<i32>} : memref<8x128xf32, #tpu.memory_space<vmem>>, vector<8x128xf32>,
    return
  }
}

</mosaic_0001>

<llo_original>
// kernel: tpu_custom_call.1
$region0: #{tpu_custom_call.1}
  #allocation0 [shape = 'u32[]', space=smem, size = 0x4, offset = 0x4, fixed_abs, tag = 'smem constant byte address 0x4 - core index']
  #allocation1 [shape = 'u32[72,128]{1,0:T(1,128)}', space=vmem, size = 0x9000, scoped, tag = 'internal scratch']
  #allocation2 [shape = 'f32[8,32]{1,0:T(8,128)}', space=vmem, size = 0x1000, scoped, tag = 'scratch operand']
  %s0 = inlined_call_operand.hbm [shape: s32[2,12], index: 0, kind: input, shape index: {}]
  %s1 = inlined_call_operand.hbm [shape: f32[8,16], index: 1, kind: input, shape index: {}]
  %s2 = inlined_call_operand.hbm [shape: f32[16,32], index: 2, kind: input, shape index: {}]
  %s3 = inlined_call_operand.vmem [shape: f32[1,32], index: 3, kind: input, shape index: {}]
  %s4 = inlined_call_operand.hbm [shape: f32[16,32], index: 4, kind: input, shape index: {}]
  %s5 = inlined_call_operand.vmem [shape: f32[1,32], index: 5, kind: input, shape index: {}]
  %s6 = inlined_call_operand.vmem [shape: f32[1,32], index: 6, kind: input, shape index: {}]
  %s7 = inlined_call_operand.vmem [shape: f32[1,32], index: 7, kind: input, shape index: {}]
  %s8 = inlined_call_operand.vmem [shape: f32[1,32], index: 8, kind: input, shape index: {}]
  %s9 = inlined_call_operand.hbm [shape: f32[32,32], index: 9, kind: input, shape index: {}]
  %s10 = inlined_call_operand.hbm [shape: f32[32,32], index: 10, kind: input, shape index: {}]
  %s11 = inlined_call_operand.hbm [shape: f32[32,32], index: 11, kind: input, shape index: {}]
  %s12 = inlined_call_operand.hbm [shape: f32[32,32], index: 12, kind: input, shape index: {}]
  %s13 = inlined_call_operand.hbm [shape: f32[32,32], index: 13, kind: input, shape index: {}]
  %s14 = inlined_call_operand.hbm [shape: f32[32,32], index: 14, kind: input, shape index: {}]
  %s15 = inlined_call_operand.vmem [shape: f32[1,32], index: 15, kind: input, shape index: {}]
  %s16 = inlined_call_operand.vmem [shape: f32[1,32], index: 16, kind: input, shape index: {}]
  %s17 = inlined_call_operand.vmem [shape: f32[1,32], index: 17, kind: input, shape index: {}]
  %s18 = inlined_call_operand.vmem [shape: f32[1,32], index: 18, kind: input, shape index: {}]
  %s19 = inlined_call_operand.vmem [shape: f32[1,32], index: 19, kind: input, shape index: {}]
  %s20 = inlined_call_operand.vmem [shape: f32[1,32], index: 20, kind: input, shape index: {}]
  %s21 = inlined_call_operand.hbm [shape: f32[32,32], index: 21, kind: input, shape index: {}]
  %s22 = inlined_call_operand.vmem [shape: f32[1,32], index: 22, kind: input, shape index: {}]
  %s23 = inlined_call_operand.hbm [shape: f32[32,128], index: 23, kind: input, shape index: {}]
  %s24 = inlined_call_operand.vmem [shape: f32[1,128], index: 24, kind: input, shape index: {}]
  %s25 = inlined_call_operand.hbm [shape: f32[8,128], index: 25, kind: output, shape index: {}]
  %s26 = sld [smem:[#allocation0]]
  $region158: #{tpu_custom_call.1} parent=0
    _
  %s28 = ssub.s32 1, %s26
  %s29 = scalar_select 0, %s28, %s26
  $region1: #{tpu_custom_call.1} parent=0
    #allocation3 [shape = 'u8[1024]{0}', space=smem, size = 0x400, scoped, tag = 'input window, operand 0, single buffered']
    #allocation4 [shape = 's32[1]{0}', space=sflag, size = 0x4, scoped, tag = 'scoped memory for tpu_custom_call.1']
    #allocation5 [shape = 's32[1]{0}', space=sflag, size = 0x4, scoped, tag = 'scoped memory for tpu_custom_call.1']
    #allocation6 [shape = 's32[1]{0}', space=sflag, size = 0x4, scoped, tag = 'scoped memory for tpu_custom_call.1']
    #allocation7 [shape = 'u8[4096]{0}', space=vmem, size = 0x1000, scoped, tag = 'input window, operand 1, single buffered']
    #allocation8 [shape = 'u8[8192]{0}', space=vmem, size = 0x2000, scoped, tag = 'input window, operand 2, single buffered']
    #allocation9 [shape = 's32[1]{0}', space=sflag, size = 0x4, scoped, tag = 'scoped memory for tpu_custom_call.1']
    #allocation10 [shape = 'u8[8192]{0}', space=vmem, size = 0x2000, scoped, tag = 'input window, operand 4, single buffered']
    #allocation11 [shape = 'u8[16384]{0}', space=vmem, size = 0x4000, scoped, tag = 'input window, operand 9, single buffered']
    #allocation12 [shape = 's32[1]{0}', space=sflag, size = 0x4, scoped, tag = 'scoped memory for tpu_custom_call.1']
    #allocation13 [shape = 'u8[16384]{0}', space=vmem, size = 0x4000, scoped, tag = 'input window, operand 10, single buffered']
    #allocation14 [shape = 'u8[16384]{0}', space=vmem, size = 0x4000, scoped, tag = 'input window, operand 11, single buffered']
    #allocation15 [shape = 's32[1]{0}', space=sflag, size = 0x4, scoped, tag = 'scoped memory for tpu_custom_call.1']
    #allocation16 [shape = 'u8[16384]{0}', space=vmem, size = 0x4000, scoped, tag = 'input window, operand 12, single buffered']
    #allocation17 [shape = 'u8[16384]{0}', space=vmem, size = 0x4000, scoped, tag = 'input window, operand 13, single buffered']
    #allocation18 [shape = 's32[1]{0}', space=sflag, size = 0x4, scoped, tag = 'scoped memory for tpu_custom_call.1']
    #allocation19 [shape = 'u8[16384]{0}', space=vmem, size = 0x4000, scoped, tag = 'input window, operand 14, single buffered']
    #allocation20 [shape = 'u8[16384]{0}', space=vmem, size = 0x4000, scoped, tag = 'input window, operand 21, single buffered']
    #allocation21 [shape = 's32[1]{0}', space=sflag, size = 0x4, scoped, tag = 'scoped memory for tpu_custom_call.1']
    #allocation22 [shape = 'u8[16384]{0}', space=vmem, size = 0x4000, scoped, tag = 'input window, operand 23, single buffered']
    #allocation23 [shape = 'u8[4096]{0}', space=vmem, size = 0x1000, scoped, tag = 'output window, operand 0, single buffered']
    %30 = vsyncpa [#allocation6], 0
    %31 = vsyncpa [#allocation4], 0
    %32 = vsyncpa [#allocation9], 0
    %33 = vsyncpa [#allocation12], 0
    %34 = vsyncpa [#allocation15], 0
    %35 = vsyncpa [#allocation18], 0
    %36 = vsyncpa [#allocation21], 0
    %37 = vsyncpa [#allocation5], 0
    // Predicated region
    $region2: #{tpu_custom_call.1} parent=1 // pred_check
      _
    $region3: #{tpu_custom_call.1} parent=1 // pred_check_branch
      %39 = sbr.rel (0) target = $region5
    $region4: #{tpu_custom_call.1} parent=1 // pred_region
      %41 = vsyncadd [#allocation6], 0
      %s43 = sshll.u32 %s0, 4
      %s44 = int_to_ptr.hbm [resolvable:$true] %s43
      %46 = dma.hbm_to_smem %s44, 32, [#allocation3], [#allocation6]
    $region5: #{tpu_custom_call.1} parent=1 // pred_fallthru
      _
    // Predicated region
    $region6: #{tpu_custom_call.1} parent=1 // pred_check
      _
    $region7: #{tpu_custom_call.1} parent=1 // pred_check_branch
      %48 = sbr.rel (0) target = $region9
    $region8: #{tpu_custom_call.1} parent=1 // pred_region
      %50 = vsyncadd [#allocation4], 0
      %s52 = sshll.u32 %s1, 4
      %s53 = int_to_ptr.hbm [resolvable:$true] %s52
      %s54 = sshll.u32 [#allocation7], 4
      %s55 = int_to_ptr.vmem [resolvable:$true] %s54
      %57 = dma.hbm_to_vmem [thread:$0]  %s53, 128, %s55, [#allocation4]
    $region9: #{tpu_custom_call.1} parent=1 // pred_fallthru
      _
    // Predicated region
    $region10: #{tpu_custom_call.1} parent=1 // pred_check
      _
    $region11: #{tpu_custom_call.1} parent=1 // pred_check_branch
      %59 = sbr.rel (0) target = $region13
    $region12: #{tpu_custom_call.1} parent=1 // pred_region
      %61 = vsyncadd [#allocation9], 0
      %s62 = sshll.u32 %s2, 4
      %s63 = int_to_ptr.hbm [resolvable:$true] %s62
      %s64 = sshll.u32 [#allocation8], 4
      %s65 = int_to_ptr.vmem [resolvable:$true] %s64
      %70 = dma.hbm_to_vmem [thread:$0]  %s63, 256, %s65, [#allocation9], 128, 128, 8
    $region13: #{tpu_custom_call.1} parent=1 // pred_fallthru
      _
    // Predicated region
    $region14: #{tpu_custom_call.1} parent=1 // pred_check
      _
    $region15: #{tpu_custom_call.1} parent=1 // pred_check_branch
      %72 = sbr.rel (0) target = $region17
    $region16: #{tpu_custom_call.1} parent=1 // pred_region
      _
    $region17: #{tpu_custom_call.1} parent=1 // pred_fallthru
      _
    // Predicated region
    $region18: #{tpu_custom_call.1} parent=1 // pred_check
      _
    $region19: #{tpu_custom_call.1} parent=1 // pred_check_branch
      %74 = sbr.rel (0) target = $region21
    $region20: #{tpu_custom_call.1} parent=1 // pred_region
      %76 = vsyncadd [#allocation9], 0
      %s77 = sshll.u32 %s4, 4
      %s78 = int_to_ptr.hbm [resolvable:$true] %s77
      %s79 = sshll.u32 [#allocation10], 4
      %s80 = int_to_ptr.vmem [resolvable:$true] %s79
      %85 = dma.hbm_to_vmem [thread:$0]  %s78, 256, %s80, [#allocation9], 128, 128, 8
    $region21: #{tpu_custom_call.1} parent=1 // pred_fallthru
      _
    // Predicated region
    $region22: #{tpu_custom_call.1} parent=1 // pred_check
      _
    $region23: #{tpu_custom_call.1} parent=1 // pred_check_branch
      %87 = sbr.rel (0) target = $region25
    $region24: #{tpu_custom_call.1} parent=1 // pred_region
      _
    $region25: #{tpu_custom_call.1} parent=1 // pred_fallthru
      _
    // Predicated region
    $region26: #{tpu_custom_call.1} parent=1 // pred_check
      _
    $region27: #{tpu_custom_call.1} parent=1 // pred_check_branch
      %89 = sbr.rel (0) target = $region29
    $region28: #{tpu_custom_call.1} parent=1 // pred_region
      _
    $region29: #{tpu_custom_call.1} parent=1 // pred_fallthru
      _
    // Predicated region
    $region30: #{tpu_custom_call.1} parent=1 // pred_check
      _
    $region31: #{tpu_custom_call.1} parent=1 // pred_check_branch
      %91 = sbr.rel (0) target = $region33
    $region32: #{tpu_custom_call.1} parent=1 // pred_region
      _
    $region33: #{tpu_custom_call.1} parent=1 // pred_fallthru
      _
    // Predicated region
    $region34: #{tpu_custom_call.1} parent=1 // pred_check
      _
    $region35: #{tpu_custom_call.1} parent=1 // pred_check_branch
      %93 = sbr.rel (0) target = $region37
    $region36: #{tpu_custom_call.1} parent=1 // pred_region
      _
    $region37: #{tpu_custom_call.1} parent=1 // pred_fallthru
      _
    // Predicated region
    $region38: #{tpu_custom_call.1} parent=1 // pred_check
      _
    $region39: #{tpu_custom_call.1} parent=1 // pred_check_branch
      %95 = sbr.rel (0) target = $region41
    $region40: #{tpu_custom_call.1} parent=1 // pred_region
      %97 = vsyncadd [#allocation12], 0
      %s98 = sshll.u32 %s9, 4
      %s99 = int_to_ptr.hbm [resolvable:$true] %s98
      %s100 = sshll.u32 [#allocation11], 4
      %s101 = int_to_ptr.vmem [resolvable:$true] %s100
      %106 = dma.hbm_to_vmem [thread:$0]  %s99, 512, %s101, [#allocation12], 128, 128, 8
    $region41: #{tpu_custom_call.1} parent=1 // pred_fallthru
      _
    // Predicated region
    $region42: #{tpu_custom_call.1} parent=1 // pred_check
      _
    $region43: #{tpu_custom_call.1} parent=1 // pred_check_branch
      %108 = sbr.rel (0) target = $region45
    $region44: #{tpu_custom_call.1} parent=1 // pred_region
      %110 = vsyncadd [#allocation12], 0
      %s111 = sshll.u32 %s10, 4
      %s112 = int_to_ptr.hbm [resolvable:$true] %s111
      %s113 = sshll.u32 [#allocation13], 4
      %s114 = int_to_ptr.vmem [resolvable:$true] %s113
      %119 = dma.hbm_to_vmem [thread:$0]  %s112, 512, %s114, [#allocation12], 128, 128, 8
    $region45: #{tpu_custom_call.1} parent=1 // pred_fallthru
      _
    // Predicated region
    $region46: #{tpu_custom_call.1} parent=1 // pred_check
      _
    $region47: #{tpu_custom_call.1} parent=1 // pred_check_branch
      %121 = sbr.rel (0) target = $region49
    $region48: #{tpu_custom_call.1} parent=1 // pred_region
      %123 = vsyncadd [#allocation15], 0
      %s124 = sshll.u32 %s11, 4
      %s125 = int_to_ptr.hbm [resolvable:$true] %s124
      %s126 = sshll.u32 [#allocation14], 4
      %s127 = int_to_ptr.vmem [resolvable:$true] %s126
      %132 = dma.hbm_to_vmem [thread:$0]  %s125, 512, %s127, [#allocation15], 128, 128, 8
    $region49: #{tpu_custom_call.1} parent=1 // pred_fallthru
      _
    // Predicated region
    $region50: #{tpu_custom_call.1} parent=1 // pred_check
      _
    $region51: #{tpu_custom_call.1} parent=1 // pred_check_branch
      %134 = sbr.rel (0) target = $region53
    $region52: #{tpu_custom_call.1} parent=1 // pred_region
      %136 = vsyncadd [#allocation15], 0
      %s137 = sshll.u32 %s12, 4
      %s138 = int_to_ptr.hbm [resolvable:$true] %s137
      %s139 = sshll.u32 [#allocation16], 4
      %s140 = int_to_ptr.vmem [resolvable:$true] %s139
      %145 = dma.hbm_to_vmem [thread:$0]  %s138, 512, %s140, [#allocation15], 128, 128, 8
    $region53: #{tpu_custom_call.1} parent=1 // pred_fallthru
      _
    // Predicated region
    $region54: #{tpu_custom_call.1} parent=1 // pred_check
      _
    $region55: #{tpu_custom_call.1} parent=1 // pred_check_branch
      %147 = sbr.rel (0) target = $region57
    $region56: #{tpu_custom_call.1} parent=1 // pred_region
      %149 = vsyncadd [#allocation18], 0
      %s150 = sshll.u32 %s13, 4
      %s151 = int_to_ptr.hbm [resolvable:$true] %s150
      %s152 = sshll.u32 [#allocation17], 4
      %s153 = int_to_ptr.vmem [resolvable:$true] %s152
      %158 = dma.hbm_to_vmem [thread:$0]  %s151, 512, %s153, [#allocation18], 128, 128, 8
    $region57: #{tpu_custom_call.1} parent=1 // pred_fallthru
      _
    // Predicated region
    $region58: #{tpu_custom_call.1} parent=1 // pred_check
      _
    $region59: #{tpu_custom_call.1} parent=1 // pred_check_branch
      %160 = sbr.rel (0) target = $region61
    $region60: #{tpu_custom_call.1} parent=1 // pred_region
      %162 = vsyncadd [#allocation18], 0
      %s163 = sshll.u32 %s14, 4
      %s164 = int_to_ptr.hbm [resolvable:$true] %s163
      %s165 = sshll.u32 [#allocation19], 4
      %s166 = int_to_ptr.vmem [resolvable:$true] %s165
      %171 = dma.hbm_to_vmem [thread:$0]  %s164, 512, %s166, [#allocation18], 128, 128, 8
    $region61: #{tpu_custom_call.1} parent=1 // pred_fallthru
      _
    // Predicated region
    $region62: #{tpu_custom_call.1} parent=1 // pred_check
      _
    $region63: #{tpu_custom_call.1} parent=1 // pred_check_branch
      %173 = sbr.rel (0) target = $region65
    $region64: #{tpu_custom_call.1} parent=1 // pred_region
      _
    $region65: #{tpu_custom_call.1} parent=1 // pred_fallthru
      _
    // Predicated region
    $region66: #{tpu_custom_call.1} parent=1 // pred_check
      _
    $region67: #{tpu_custom_call.1} parent=1 // pred_check_branch
      %175 = sbr.rel (0) target = $region69
    $region68: #{tpu_custom_call.1} parent=1 // pred_region
      _
    $region69: #{tpu_custom_call.1} parent=1 // pred_fallthru
      _
    // Predicated region
    $region70: #{tpu_custom_call.1} parent=1 // pred_check
      _
    $region71: #{tpu_custom_call.1} parent=1 // pred_check_branch
      %177 = sbr.rel (0) target = $region73
    $region72: #{tpu_custom_call.1} parent=1 // pred_region
      _
    $region73: #{tpu_custom_call.1} parent=1 // pred_fallthru
      _
    // Predicated region
    $region74: #{tpu_custom_call.1} parent=1 // pred_check
      _
    $region75: #{tpu_custom_call.1} parent=1 // pred_check_branch
      %179 = sbr.rel (0) target = $region77
    $region76: #{tpu_custom_call.1} parent=1 // pred_region
      _
    $region77: #{tpu_custom_call.1} parent=1 // pred_fallthru
      _
    // Predicated region
    $region78: #{tpu_custom_call.1} parent=1 // pred_check
      _
    $region79: #{tpu_custom_call.1} parent=1 // pred_check_branch
      %181 = sbr.rel (0) target = $region81
    $region80: #{tpu_custom_call.1} parent=1 // pred_region
      _
    $region81: #{tpu_custom_call.1} parent=1 // pred_fallthru
      _
    // Predicated region
    $region82: #{tpu_custom_call.1} parent=1 // pred_check
      _
    $region83: #{tpu_custom_call.1} parent=1 // pred_check_branch
      %183 = sbr.rel (0) target = $region85
    $region84: #{tpu_custom_call.1} parent=1 // pred_region
      _
    $region85: #{tpu_custom_call.1} parent=1 // pred_fallthru
      _
    // Predicated region
    $region86: #{tpu_custom_call.1} parent=1 // pred_check
      _
    $region87: #{tpu_custom_call.1} parent=1 // pred_check_branch
      %185 = sbr.rel (0) target = $region89
    $region88: #{tpu_custom_call.1} parent=1 // pred_region
      %187 = vsyncadd [#allocation21], 0
      %s188 = sshll.u32 %s21, 4
      %s189 = int_to_ptr.hbm [resolvable:$true] %s188
      %s190 = sshll.u32 [#allocation20], 4
      %s191 = int_to_ptr.vmem [resolvable:$true] %s190
      %196 = dma.hbm_to_vmem [thread:$0]  %s189, 512, %s191, [#allocation21], 128, 128, 8
    $region89: #{tpu_custom_call.1} parent=1 // pred_fallthru
      _
    // Predicated region
    $region90: #{tpu_custom_call.1} parent=1 // pred_check
      _
    $region91: #{tpu_custom_call.1} parent=1 // pred_check_branch
      %198 = sbr.rel (0) target = $region93
    $region92: #{tpu_custom_call.1} parent=1 // pred_region
      _
    $region93: #{tpu_custom_call.1} parent=1 // pred_fallthru
      _
    // Predicated region
    $region94: #{tpu_custom_call.1} parent=1 // pred_check
      _
    $region95: #{tpu_custom_call.1} parent=1 // pred_check_branch
      %200 = sbr.rel (0) target = $region97
    $region96: #{tpu_custom_call.1} parent=1 // pred_region
      %202 = vsyncadd [#allocation21], 0
      %s203 = sshll.u32 %s23, 4
      %s204 = int_to_ptr.hbm [resolvable:$true] %s203
      %s205 = sshll.u32 [#allocation22], 4
      %s206 = int_to_ptr.vmem [resolvable:$true] %s205
      %211 = dma.hbm_to_vmem [thread:$0]  %s204, 512, %s206, [#allocation21], 128, 128, 8
    $region97: #{tpu_custom_call.1} parent=1 // pred_fallthru
      _
    // Predicated region
    $region98: #{tpu_custom_call.1} parent=1 // pred_check
      _
    $region99: #{tpu_custom_call.1} parent=1 // pred_check_branch
      %213 = sbr.rel (0) target = $region101
    $region100: #{tpu_custom_call.1} parent=1 // pred_region
      _
    $region101: #{tpu_custom_call.1} parent=1 // pred_fallthru
      _
    // Predicated region
    $region102: #{tpu_custom_call.1} parent=1 // pred_check
      _
    $region103: #{tpu_custom_call.1} parent=1 // pred_check_branch
      %215 = sbr.rel (0) target = $region105
    $region104: #{tpu_custom_call.1} parent=1 // pred_region
      %217 = dma.done [#allocation6], 32
    $region105: #{tpu_custom_call.1} parent=1 // pred_fallthru
      _
    // Predicated region
    $region106: #{tpu_custom_call.1} parent=1 // pred_check
      _
    $region107: #{tpu_custom_call.1} parent=1 // pred_check_branch
      %219 = sbr.rel (0) target = $region109
    $region108: #{tpu_custom_call.1} parent=1 // pred_region
      %221 = dma.done [#allocation4], 128
    $region109: #{tpu_custom_call.1} parent=1 // pred_fallthru
      _
    // Predicated region
    $region110: #{tpu_custom_call.1} parent=1 // pred_check
      _
    $region111: #{tpu_custom_call.1} parent=1 // pred_check_branch
      %223 = sbr.rel (0) target = $region113
    $region112: #{tpu_custom_call.1} parent=1 // pred_region
      %225 = dma.done [#allocation9], 256
    $region113: #{tpu_custom_call.1} parent=1 // pred_fallthru
      _
    // Predicated region
    $region114: #{tpu_custom_call.1} parent=1 // pred_check
      _
    $region115: #{tpu_custom_call.1} parent=1 // pred_check_branch
      %227 = sbr.rel (0) target = $region117
    $region116: #{tpu_custom_call.1} parent=1 // pred_region
      %229 = dma.done [#allocation9], 256
    $region117: #{tpu_custom_call.1} parent=1 // pred_fallthru
      _
    // Predicated region
    $region118: #{tpu_custom_call.1} parent=1 // pred_check
      _
    $region119: #{tpu_custom_call.1} parent=1 // pred_check_branch
      %231 = sbr.rel (0) target = $region121
    $region120: #{tpu_custom_call.1} parent=1 // pred_region
      %233 = dma.done [#allocation12], 512
    $region121: #{tpu_custom_call.1} parent=1 // pred_fallthru
      _
    // Predicated region
    $region122: #{tpu_custom_call.1} parent=1 // pred_check
      _
    $region123: #{tpu_custom_call.1} parent=1 // pred_check_branch
      %235 = sbr.rel (0) target = $region125
    $region124: #{tpu_custom_call.1} parent=1 // pred_region
      %237 = dma.done [#allocation12], 512
    $region125: #{tpu_custom_call.1} parent=1 // pred_fallthru
      _
    // Predicated region
    $region126: #{tpu_custom_call.1} parent=1 // pred_check
      _
    $region127: #{tpu_custom_call.1} parent=1 // pred_check_branch
      %239 = sbr.rel (0) target = $region129
    $region128: #{tpu_custom_call.1} parent=1 // pred_region
      %241 = dma.done [#allocation15], 512
    $region129: #{tpu_custom_call.1} parent=1 // pred_fallthru
      _
    // Predicated region
    $region130: #{tpu_custom_call.1} parent=1 // pred_check
      _
    $region131: #{tpu_custom_call.1} parent=1 // pred_check_branch
      %243 = sbr.rel (0) target = $region133
    $region132: #{tpu_custom_call.1} parent=1 // pred_region
      %245 = dma.done [#allocation15], 512
    $region133: #{tpu_custom_call.1} parent=1 // pred_fallthru
      _
    // Predicated region
    $region134: #{tpu_custom_call.1} parent=1 // pred_check
      _
    $region135: #{tpu_custom_call.1} parent=1 // pred_check_branch
      %247 = sbr.rel (0) target = $region137
    $region136: #{tpu_custom_call.1} parent=1 // pred_region
      %249 = dma.done [#allocation18], 512
    $region137: #{tpu_custom_call.1} parent=1 // pred_fallthru
      _
    // Predicated region
    $region138: #{tpu_custom_call.1} parent=1 // pred_check
      _
    $region139: #{tpu_custom_call.1} parent=1 // pred_check_branch
      %251 = sbr.rel (0) target = $region141
    $region140: #{tpu_custom_call.1} parent=1 // pred_region
      %253 = dma.done [#allocation18], 512
    $region141: #{tpu_custom_call.1} parent=1 // pred_fallthru
      _
    // Predicated region
    $region142: #{tpu_custom_call.1} parent=1 // pred_check
      _
    $region143: #{tpu_custom_call.1} parent=1 // pred_check_branch
      %255 = sbr.rel (0) target = $region145
    $region144: #{tpu_custom_call.1} parent=1 // pred_region
      %257 = dma.done [#allocation21], 512
    $region145: #{tpu_custom_call.1} parent=1 // pred_fallthru
      _
    // Predicated region
    $region146: #{tpu_custom_call.1} parent=1 // pred_check
      _
    $region147: #{tpu_custom_call.1} parent=1 // pred_check_branch
      %259 = sbr.rel (0) target = $region149
    $region148: #{tpu_custom_call.1} parent=1 // pred_region
      %261 = dma.done [#allocation21], 512
    $region149: #{tpu_custom_call.1} parent=1 // pred_fallthru
      _
    %262 = sfence
    %v263 = vlaneseq
    %v264 = vshrl.u32 %v263, 7
    %v265 = vlaneseq
    %v266 = vand.u32 %v265, 127
    %vm267 = vcmp.eq.s32.totalorder %v264, %v266
    %s268 = sld [smem:[#allocation3]]
    %s269 = sld [smem:[#allocation3 + $0x80]]
    %v270 = vstv %s269
    %vm271 = vcmp.eq.s32.totalorder %v264, %v270
    %v272 = vstv %s268
    %vm273 = vcmp.eq.s32.totalorder %v266, %v272
    %vm274 = vmand %vm271, %vm273
    %vm275 = vmor %vm267, %vm274
    %s276 = sld [smem:[#allocation3 + $0x1]]
    %s277 = sld [smem:[#allocation3 + $0x81]]
    %v278 = vstv %s277
    %vm279 = vcmp.eq.s32.totalorder %v264, %v278
    %v280 = vstv %s276
    %vm281 = vcmp.eq.s32.totalorder %v266, %v280
    %vm282 = vmand %vm279, %vm281
    %vm283 = vmor %vm275, %vm282
    %s284 = sld [smem:[#allocation3 + $0x2]]
    %s285 = sld [smem:[#allocation3 + $0x82]]
    %v286 = vstv %s285
    %vm287 = vcmp.eq.s32.totalorder %v264, %v286
    %v288 = vstv %s284
    %vm289 = vcmp.eq.s32.totalorder %v266, %v288
    %vm290 = vmand %vm287, %vm289
    %vm291 = vmor %vm283, %vm290
    %s292 = sld [smem:[#allocation3 + $0x3]]
    %s293 = sld [smem:[#allocation3 + $0x83]]
    %v294 = vstv %s293
    %vm295 = vcmp.eq.s32.totalorder %v264, %v294
    %v296 = vstv %s292
    %vm297 = vcmp.eq.s32.totalorder %v266, %v296
    %vm298 = vmand %vm295, %vm297
    %vm299 = vmor %vm291, %vm298
    %s300 = sld [smem:[#allocation3 + $0x4]]
    %s301 = sld [smem:[#allocation3 + $0x84]]
    %v302 = vstv %s301
    %vm303 = vcmp.eq.s32.totalorder %v264, %v302
    %v304 = vstv %s300
    %vm305 = vcmp.eq.s32.totalorder %v266, %v304
    %vm306 = vmand %vm303, %vm305
    %vm307 = vmor %vm299, %vm306
    %s308 = sld [smem:[#allocation3 + $0x5]]
    %s309 = sld [smem:[#allocation3 + $0x85]]
    %v310 = vstv %s309
    %vm311 = vcmp.eq.s32.totalorder %v264, %v310
    %v312 = vstv %s308
    %vm313 = vcmp.eq.s32.totalorder %v266, %v312
    %vm314 = vmand %vm311, %vm313
    %vm315 = vmor %vm307, %vm314
    %s316 = sld [smem:[#allocation3 + $0x6]]
    %s317 = sld [smem:[#allocation3 + $0x86]]
    %v318 = vstv %s317
    %vm319 = vcmp.eq.s32.totalorder %v264, %v318
    %v320 = vstv %s316
    %vm321 = vcmp.eq.s32.totalorder %v266, %v320
    %vm322 = vmand %vm319, %vm321
    %vm323 = vmor %vm315, %vm322
    %s324 = sld [smem:[#allocation3 + $0x7]]
    %s325 = sld [smem:[#allocation3 + $0x87]]
    %v326 = vstv %s325
    %vm327 = vcmp.eq.s32.totalorder %v264, %v326
    %v328 = vstv %s324
    %vm329 = vcmp.eq.s32.totalorder %v266, %v328
    %vm330 = vmand %vm327, %vm329
    %vm331 = vmor %vm323, %vm330
    %s332 = sld [smem:[#allocation3 + $0x8]]
    %s333 = sld [smem:[#allocation3 + $0x88]]
    %v334 = vstv %s333
    %vm335 = vcmp.eq.s32.totalorder %v264, %v334
    %v336 = vstv %s332
    %vm337 = vcmp.eq.s32.totalorder %v266, %v336
    %vm338 = vmand %vm335, %vm337
    %vm339 = vmor %vm331, %vm338
    %s340 = sld [smem:[#allocation3 + $0x9]]
    %s341 = sld [smem:[#allocation3 + $0x89]]
    %v342 = vstv %s341
    %vm343 = vcmp.eq.s32.totalorder %v264, %v342
    %v344 = vstv %s340
    %vm345 = vcmp.eq.s32.totalorder %v266, %v344
    %vm346 = vmand %vm343, %vm345
    %vm347 = vmor %vm339, %vm346
    %s348 = sld [smem:[#allocation3 + $0xa]]
    %s349 = sld [smem:[#allocation3 + $0x8a]]
    %v350 = vstv %s349
    %vm351 = vcmp.eq.s32.totalorder %v264, %v350
    %v352 = vstv %s348
    %vm353 = vcmp.eq.s32.totalorder %v266, %v352
    %vm354 = vmand %vm351, %vm353
    %vm355 = vmor %vm347, %vm354
    %s356 = sld [smem:[#allocation3 + $0xb]]
    %s357 = sld [smem:[#allocation3 + $0x8b]]
    %v358 = vstv %s357
    %vm359 = vcmp.eq.s32.totalorder %v264, %v358
    %v360 = vstv %s356
    %vm361 = vcmp.eq.s32.totalorder %v266, %v360
    %vm362 = vmand %vm359, %vm361
    %vm363 = vmor %vm355, %vm362
    %v364 = vld [vmem:[#allocation7] sm:$0xff]
    %v365 = vld [vmem:[#allocation8] sm:$0xff]
    %v366 = vld [vmem:[#allocation8 + $0x8] sm:$0xff]
    %v367 = vld [vmem:[%s3] sm:$0x1]
    %v369 = vperm.slane %v367, 0
    %vm371 = vcmask 130048
    %v373 = vsel %vm371, %v364, 0
    %375 = vmatpush.msra.mxu0 0.0
    %376 = vmatpush.msra.mxu0 0.0
    %377 = vmatpush.msra.mxu0 0.0
    %378 = vmatpush.msra.mxu0 0.0
    %379 = vmatpush.msra.mxu0 0.0
    %380 = vmatpush.msra.mxu0 0.0
    %381 = vmatpush.msra.mxu0 0.0
    %382 = vmatpush.msra.mxu0 0.0
    %383 = vmatpush.msra.mxu0 0.0
    %384 = vmatpush.msra.mxu0 0.0
    %385 = vmatpush.msra.mxu0 0.0
    %386 = vmatpush.msra.mxu0 0.0
    %387 = vmatpush.msra.mxu0 0.0
    %388 = vmatpush.msra.mxu0 0.0
    %389 = vmatpush.msra.mxu0 %v366
    %390 = vmatpush.msra.mxu0 %v365
    %391 = vmatmul.f32.gmra.mxu0 %v373
    %v392 = vpop.f32.mrf.mxu0
    %v393 = vadd.f32 %v369, %v392
    %394 = vdwg.mxu0
    %v395 = vld [vmem:[#allocation10] sm:$0xff]
    %v396 = vld [vmem:[#allocation10 + $0x8] sm:$0xff]
    %v397 = vld [vmem:[%s5] sm:$0x1]
    %v399 = vperm.slane %v397, 0
    %401 = vmatpush.msra.mxu0 0.0
    %402 = vmatpush.msra.mxu0 0.0
    %403 = vmatpush.msra.mxu0 0.0
    %404 = vmatpush.msra.mxu0 0.0
    %405 = vmatpush.msra.mxu0 0.0
    %406 = vmatpush.msra.mxu0 0.0
    %407 = vmatpush.msra.mxu0 0.0
    %408 = vmatpush.msra.mxu0 0.0
    %409 = vmatpush.msra.mxu0 0.0
    %410 = vmatpush.msra.mxu0 0.0
    %411 = vmatpush.msra.mxu0 0.0
    %412 = vmatpush.msra.mxu0 0.0
    %413 = vmatpush.msra.mxu0 0.0
    %414 = vmatpush.msra.mxu0 0.0
    %415 = vmatpush.msra.mxu0 %v396
    %416 = vmatpush.msra.mxu0 %v395
    %417 = vmatmul.f32.gmra.mxu0 %v373
    %v418 = vpop.f32.mrf.mxu0
    %v419 = vadd.f32 %v399, %v418
    %420 = vdwg.mxu0
    %v422 = vrot.slane %v419, 1
    %v423 = vrot.slane %v419, 2
    %v424 = vrot.slane %v419, 3
    %v425 = vrot.slane %v419, 4
    %v426 = vrot.slane %v419, 5
    %v427 = vrot.slane %v419, 6
    %v428 = vrot.slane %v419, 7
    %v429 = vperm.slane %v419, 0
    %v430 = vperm.slane %v422, 0
    %v431 = vperm.slane %v423, 0
    %v432 = vperm.slane %v424, 0
    %v433 = vperm.slane %v425, 0
    %v434 = vperm.slane %v426, 0
    %v435 = vperm.slane %v427, 0
    %v436 = vperm.slane %v428, 0
    %v445 = vadd.f32 %v393, %v429
    %v446 = vadd.f32 %v393, %v430
    %v447 = vadd.f32 %v393, %v431
    %v448 = vadd.f32 %v393, %v432
    %v449 = vadd.f32 %v393, %v433
    %v450 = vadd.f32 %v393, %v434
    %v451 = vadd.f32 %v393, %v435
    %v452 = vadd.f32 %v393, %v436
    %vm453 = vcmp.ge.f32.partialorder %v445, 0.0
    %vm454 = vcmp.ge.f32.partialorder %v446, 0.0
    %vm455 = vcmp.ge.f32.partialorder %v447, 0.0
    %vm456 = vcmp.ge.f32.partialorder %v448, 0.0
    %vm457 = vcmp.ge.f32.partialorder %v449, 0.0
    %vm458 = vcmp.ge.f32.partialorder %v450, 0.0
    %vm459 = vcmp.ge.f32.partialorder %v451, 0.0
    %vm460 = vcmp.ge.f32.partialorder %v452, 0.0
    %v461 = vmul.f32 %v445, 0.2
    %v462 = vmul.f32 %v446, 0.2
    %v463 = vmul.f32 %v447, 0.2
    %v464 = vmul.f32 %v448, 0.2
    %v465 = vmul.f32 %v449, 0.2
    %v466 = vmul.f32 %v450, 0.2
    %v467 = vmul.f32 %v451, 0.2
    %v468 = vmul.f32 %v452, 0.2
    %v469 = vsel %vm453, %v445, %v461
    %v470 = vsel %vm454, %v446, %v462
    %v471 = vsel %vm455, %v447, %v463
    %v472 = vsel %vm456, %v448, %v464
    %v473 = vsel %vm457, %v449, %v465
    %v474 = vsel %vm458, %v450, %v466
    %v475 = vsel %vm459, %v451, %v467
    %v476 = vsel %vm460, %v452, %v468
    %v477 = vld [vmem:[%s6] sm:$0x1]
    %v479 = vperm.slane %v477, 0
    %v481 = vmul.f32 %v469, %v479
    %v482 = vmul.f32 %v470, %v479
    %v483 = vmul.f32 %v471, %v479
    %v484 = vmul.f32 %v472, %v479
    %v485 = vmul.f32 %v473, %v479
    %v486 = vmul.f32 %v474, %v479
    %v487 = vmul.f32 %v475, %v479
    %v488 = vmul.f32 %v476, %v479
    %vm489 = vcmask 261120
    %v490 = vsel %vm489, %v481, 0.0
    %491 = vadd.xlane.f32.xlu0 %v490
    %v492 = vpop.xlane.xlu0 %491
    %v493 = vsel %vm489, %v482, 0.0
    %494 = vadd.xlane.f32.xlu0 %v493
    %v495 = vpop.xlane.xlu0 %494
    %v496 = vsel %vm489, %v483, 0.0
    %497 = vadd.xlane.f32.xlu0 %v496
    %v498 = vpop.xlane.xlu0 %497
    %v499 = vsel %vm489, %v484, 0.0
    %500 = vadd.xlane.f32.xlu0 %v499
    %v501 = vpop.xlane.xlu0 %500
    %v502 = vsel %vm489, %v485, 0.0
    %503 = vadd.xlane.f32.xlu0 %v502
    %v504 = vpop.xlane.xlu0 %503
    %v505 = vsel %vm489, %v486, 0.0
    %506 = vadd.xlane.f32.xlu0 %v505
    %v507 = vpop.xlane.xlu0 %506
    %v508 = vsel %vm489, %v487, 0.0
    %509 = vadd.xlane.f32.xlu0 %v508
    %v510 = vpop.xlane.xlu0 %509
    %v511 = vsel %vm489, %v488, 0.0
    %512 = vadd.xlane.f32.xlu0 %v511
    %v513 = vpop.xlane.xlu0 %512
    %v522 = vperm.slane %v492, %v266
    %v523 = vperm.slane %v495, %v266
    %v524 = vperm.slane %v498, %v266
    %v525 = vperm.slane %v501, %v266
    %v526 = vperm.slane %v504, %v266
    %v527 = vperm.slane %v507, %v266
    %v528 = vperm.slane %v510, %v266
    %v529 = vperm.slane %v513, %v266
    %vm530 = vcmask 1041409
    %v531 = vsel %vm530, %v523, %v522
    %vm532 = vcmask 1042434
    %v533 = vsel %vm532, %v524, %v531
    %vm534 = vcmask 1043459
    %v535 = vsel %vm534, %v525, %v533
    %vm536 = vcmask 1044484
    %v537 = vsel %vm536, %v526, %v535
    %vm538 = vcmask 1045509
    %v539 = vsel %vm538, %v527, %v537
    %vm540 = vcmask 1046534
    %v541 = vsel %vm540, %v528, %v539
    %vm542 = vcmask 1047559
    %v543 = vsel %vm542, %v529, %v541
    %v545 = vsel %vm363, %v543, -1e+30
    %vm546 = vcmask 64512
    %v547 = vsel %vm546, %v545, -inf
    %548 = vmax.xlane.f32.xlu0 %v547
    %v549 = vpop.xlane.xlu0 %548
    %v550 = vsub.f32 %v545, %v549
    %v551 = vmul.f32 %v550, 1.442695
    %v552 = vpow.pop %v551
    %v553 = vsel %vm363, %v552, 0.0
    %v554 = vsel %vm546, %v553, 0.0
    %555 = vadd.xlane.f32.xlu0 %v554
    %v556 = vpop.xlane.xlu0 %555
    %v557 = vrcp.pop %v556
    %v558 = vmul.f32 %v556, %v557
    %v559 = vsub.f32 1.0, %v558
    %v560 = vmul.f32 %v557, %v559
    %v561 = vadd.f32 %v557, %v560
    %vm562 = vweird.f32 %v556
    %vm563 = vweird.f32 %v557
    %vm564 = vmor %vm562, %vm563
    %v565 = vsel %vm564, %v557, %v561
    %v566 = vand.u32 2147483647, %v556
    %vm567 = vcmp.eq.f32.partialorder %v566, 8.507059e+37
    %v568 = vand.u32 %v556, 2147483648
    %v569 = vor.u32 1.1754944e-38, %v568
    %v570 = vsel %vm567, %v569, %v565
    %v571 = vmul.f32 %v553, %v570
    %v572 = vld [vmem:[%s7] sm:$0x1]
    %v574 = vperm.slane %v572, 0
    %v577 = vsel %vm546, %v571, 0
    %579 = vmatpush.msra.mxu0 0.0
    %580 = vmatpush.msra.mxu0 0.0
    %581 = vmatpush.msra.mxu0 0.0
    %582 = vmatpush.msra.mxu0 0.0
    %583 = vmatpush.msra.mxu0 0.0
    %584 = vmatpush.msra.mxu0 0.0
    %585 = vmatpush.msra.mxu0 0.0
    %586 = vmatpush.msra.mxu0 0.0
    %587 = vmatpush.msra.mxu0 0.0
    %588 = vmatpush.msra.mxu0 0.0
    %589 = vmatpush.msra.mxu0 0.0
    %590 = vmatpush.msra.mxu0 0.0
    %591 = vmatpush.msra.mxu0 0.0
    %592 = vmatpush.msra.mxu0 0.0
    %593 = vmatpush.msra.mxu0 0.0
    %594 = vmatpush.msra.mxu0 %v393
    %595 = vmatmul.f32.gmra.mxu0 %v577
    %v596 = vpop.f32.mrf.mxu0
    %v597 = vadd.f32 %v574, %v596
    %598 = vdwg.mxu0
    %v599 = vmax.f32 %v597, 0.0
    %v600 = vld [vmem:[#allocation11] sm:$0xff]
    %v601 = vld [vmem:[#allocation11 + $0x8] sm:$0xff]
    %v602 = vld [vmem:[#allocation11 + $0x10] sm:$0xff]
    %v603 = vld [vmem:[#allocation11 + $0x18] sm:$0xff]
    %v604 = vld [vmem:[%s15] sm:$0x1]
    %v606 = vperm.slane %v604, 0
    %v609 = vsel %vm489, %v599, 0
    %611 = vmatpush.msra.mxu0 0.0
    %612 = vmatpush.msra.mxu0 0.0
    %613 = vmatpush.msra.mxu0 0.0
    %614 = vmatpush.msra.mxu0 0.0
    %615 = vmatpush.msra.mxu0 0.0
    %616 = vmatpush.msra.mxu0 0.0
    %617 = vmatpush.msra.mxu0 0.0
    %618 = vmatpush.msra.mxu0 0.0
    %619 = vmatpush.msra.mxu0 0.0
    %620 = vmatpush.msra.mxu0 0.0
    %621 = vmatpush.msra.mxu0 0.0
    %622 = vmatpush.msra.mxu0 0.0
    %623 = vmatpush.msra.mxu0 %v603
    %624 = vmatpush.msra.mxu0 %v602
    %625 = vmatpush.msra.mxu0 %v601
    %626 = vmatpush.msra.mxu0 %v600
    %627 = vmatmul.f32.gmra.mxu0 %v609
    %v628 = vpop.f32.mrf.mxu0
    %v629 = vadd.f32 %v606, %v628
    %630 = vdwg.mxu0
    %v631 = vld [vmem:[#allocation13] sm:$0xff]
    %v632 = vld [vmem:[#allocation13 + $0x8] sm:$0xff]
    %v633 = vld [vmem:[#allocation13 + $0x10] sm:$0xff]
    %v634 = vld [vmem:[#allocation13 + $0x18] sm:$0xff]
    %v635 = vld [vmem:[%s16] sm:$0x1]
    %v637 = vperm.slane %v635, 0
    %639 = vmatpush.msra.mxu0 0.0
    %640 = vmatpush.msra.mxu0 0.0
    %641 = vmatpush.msra.mxu0 0.0
    %642 = vmatpush.msra.mxu0 0.0
    %643 = vmatpush.msra.mxu0 0.0
    %644 = vmatpush.msra.mxu0 0.0
    %645 = vmatpush.msra.mxu0 0.0
    %646 = vmatpush.msra.mxu0 0.0
    %647 = vmatpush.msra.mxu0 0.0
    %648 = vmatpush.msra.mxu0 0.0
    %649 = vmatpush.msra.mxu0 0.0
    %650 = vmatpush.msra.mxu0 0.0
    %651 = vmatpush.msra.mxu0 %v634
    %652 = vmatpush.msra.mxu0 %v633
    %653 = vmatpush.msra.mxu0 %v632
    %654 = vmatpush.msra.mxu0 %v631
    %655 = vmatmul.f32.gmra.mxu0 %v609
    %v656 = vpop.f32.mrf.mxu0
    %v657 = vadd.f32 %v637, %v656
    %658 = vdwg.mxu0
    %v659 = vld [vmem:[#allocation14] sm:$0xff]
    %v660 = vld [vmem:[#allocation14 + $0x8] sm:$0xff]
    %v661 = vld [vmem:[#allocation14 + $0x10] sm:$0xff]
    %v662 = vld [vmem:[#allocation14 + $0x18] sm:$0xff]
    %v663 = vld [vmem:[%s17] sm:$0x1]
    %v665 = vperm.slane %v663, 0
    %667 = vmatpush.msra.mxu0 0.0
    %668 = vmatpush.msra.mxu0 0.0
    %669 = vmatpush.msra.mxu0 0.0
    %670 = vmatpush.msra.mxu0 0.0
    %671 = vmatpush.msra.mxu0 0.0
    %672 = vmatpush.msra.mxu0 0.0
    %673 = vmatpush.msra.mxu0 0.0
    %674 = vmatpush.msra.mxu0 0.0
    %675 = vmatpush.msra.mxu0 0.0
    %676 = vmatpush.msra.mxu0 0.0
    %677 = vmatpush.msra.mxu0 0.0
    %678 = vmatpush.msra.mxu0 0.0
    %679 = vmatpush.msra.mxu0 %v662
    %680 = vmatpush.msra.mxu0 %v661
    %681 = vmatpush.msra.mxu0 %v660
    %682 = vmatpush.msra.mxu0 %v659
    %683 = vmatmul.f32.gmra.mxu0 %v609
    %v684 = vpop.f32.mrf.mxu0
    %v685 = vadd.f32 %v665, %v684
    %686 = vdwg.mxu0
    %v687 = vld [vmem:[%s8] sm:$0x1]
    %v688 = vld [vmem:[#allocation16] sm:$0xff]
    %v689 = vld [vmem:[#allocation16 + $0x8] sm:$0xff]
    %v690 = vld [vmem:[#allocation16 + $0x10] sm:$0xff]
    %v691 = vld [vmem:[#allocation16 + $0x18] sm:$0xff]
    %v692 = vld [vmem:[%s18] sm:$0x1]
    %v694 = vsel %vm489, %v687, 0
    %696 = vmatpush.msra.mxu0 0.0
    %697 = vmatpush.msra.mxu0 0.0
    %698 = vmatpush.msra.mxu0 0.0
    %699 = vmatpush.msra.mxu0 0.0
    %700 = vmatpush.msra.mxu0 0.0
    %701 = vmatpush.msra.mxu0 0.0
    %702 = vmatpush.msra.mxu0 0.0
    %703 = vmatpush.msra.mxu0 0.0
    %704 = vmatpush.msra.mxu0 0.0
    %705 = vmatpush.msra.mxu0 0.0
    %706 = vmatpush.msra.mxu0 0.0
    %707 = vmatpush.msra.mxu0 0.0
    %708 = vmatpush.msra.mxu0 %v691
    %709 = vmatpush.msra.mxu0 %v690
    %710 = vmatpush.msra.mxu0 %v689
    %711 = vmatpush.msra.mxu0 %v688
    %712 = vmatmul.f32.gmra.mxu0 %v694
    %v713 = vpop.f32.mrf.mxu0
    %v714 = vadd.f32 %v692, %v713
    %715 = vdwg.mxu0
    %v716 = vld [vmem:[#allocation17] sm:$0xff]
    %v717 = vld [vmem:[#allocation17 + $0x8] sm:$0xff]
    %v718 = vld [vmem:[#allocation17 + $0x10] sm:$0xff]
    %v719 = vld [vmem:[#allocation17 + $0x18] sm:$0xff]
    %v720 = vld [vmem:[%s19] sm:$0x1]
    %721 = vmatpush.msra.mxu0 0.0
    %722 = vmatpush.msra.mxu0 0.0
    %723 = vmatpush.msra.mxu0 0.0
    %724 = vmatpush.msra.mxu0 0.0
    %725 = vmatpush.msra.mxu0 0.0
    %726 = vmatpush.msra.mxu0 0.0
    %727 = vmatpush.msra.mxu0 0.0
    %728 = vmatpush.msra.mxu0 0.0
    %729 = vmatpush.msra.mxu0 0.0
    %730 = vmatpush.msra.mxu0 0.0
    %731 = vmatpush.msra.mxu0 0.0
    %732 = vmatpush.msra.mxu0 0.0
    %733 = vmatpush.msra.mxu0 %v719
    %734 = vmatpush.msra.mxu0 %v718
    %735 = vmatpush.msra.mxu0 %v717
    %736 = vmatpush.msra.mxu0 %v716
    %737 = vmatmul.f32.gmra.mxu0 %v694
    %v738 = vpop.f32.mrf.mxu0
    %v739 = vadd.f32 %v720, %v738
    %740 = vdwg.mxu0
    %v741 = vld [vmem:[#allocation19] sm:$0xff]
    %v742 = vld [vmem:[#allocation19 + $0x8] sm:$0xff]
    %v743 = vld [vmem:[#allocation19 + $0x10] sm:$0xff]
    %v744 = vld [vmem:[#allocation19 + $0x18] sm:$0xff]
    %v745 = vld [vmem:[%s20] sm:$0x1]
    %746 = vmatpush.msra.mxu0 0.0
    %747 = vmatpush.msra.mxu0 0.0
    %748 = vmatpush.msra.mxu0 0.0
    %749 = vmatpush.msra.mxu0 0.0
    %750 = vmatpush.msra.mxu0 0.0
    %751 = vmatpush.msra.mxu0 0.0
    %752 = vmatpush.msra.mxu0 0.0
    %753 = vmatpush.msra.mxu0 0.0
    %754 = vmatpush.msra.mxu0 0.0
    %755 = vmatpush.msra.mxu0 0.0
    %756 = vmatpush.msra.mxu0 0.0
    %757 = vmatpush.msra.mxu0 0.0
    %758 = vmatpush.msra.mxu0 %v744
    %759 = vmatpush.msra.mxu0 %v743
    %760 = vmatpush.msra.mxu0 %v742
    %761 = vmatpush.msra.mxu0 %v741
    %762 = vmatmul.f32.gmra.mxu0 %v694
    %v763 = vpop.f32.mrf.mxu0
    %v764 = vadd.f32 %v745, %v763
    %765 = vdwg.mxu0
    %v766 = vadd.f32 %v629, %v714
    %v767 = vxor.u32 %v766, 2147483648
    %v768 = vmul.f32 %v767, 1.442695
    %v769 = vpow.pop %v768
    %v770 = vadd.f32 %v769, 1.0
    %v771 = vrcp.pop %v770
    %v772 = vmul.f32 %v770, %v771
    %v773 = vsub.f32 1.0, %v772
    %v774 = vmul.f32 %v771, %v773
    %v775 = vadd.f32 %v771, %v774
    %vm776 = vweird.f32 %v770
    %vm777 = vweird.f32 %v771
    %vm778 = vmor %vm776, %vm777
    %v779 = vsel %vm778, %v771, %v775
    %v780 = vand.u32 2147483647, %v770
    %vm781 = vcmp.eq.f32.partialorder %v780, 8.507059e+37
    %v782 = vand.u32 %v770, 2147483648
    %v783 = vor.u32 1.1754944e-38, %v782
    %v784 = vsel %vm781, %v783, %v779
    %v785 = vmul.f32 1.0, %v784
    %v786 = vadd.f32 %v657, %v739
    %v787 = vxor.u32 %v786, 2147483648
    %v788 = vmul.f32 %v787, 1.442695
    %v789 = vpow.pop %v788
    %v790 = vadd.f32 %v789, 1.0
    %v791 = vrcp.pop %v790
    %v792 = vmul.f32 %v790, %v791
    %v793 = vsub.f32 1.0, %v792
    %v794 = vmul.f32 %v791, %v793
    %v795 = vadd.f32 %v791, %v794
    %vm796 = vweird.f32 %v790
    %vm797 = vweird.f32 %v791
    %vm798 = vmor %vm796, %vm797
    %v799 = vsel %vm798, %v791, %v795
    %v800 = vand.u32 2147483647, %v790
    %vm801 = vcmp.eq.f32.partialorder %v800, 8.507059e+37
    %v802 = vand.u32 %v790, 2147483648
    %v803 = vor.u32 1.1754944e-38, %v802
    %v804 = vsel %vm801, %v803, %v799
    %v805 = vmul.f32 1.0, %v804
    %v806 = vmul.f32 %v785, %v764
    %v807 = vadd.f32 %v685, %v806
    %v808 = vtanh.pop %v807
    %v809 = vsub.f32 1.0, %v805
    %v810 = vmul.f32 %v809, %v808
    %v811 = vmul.f32 %v805, %v687
    %v812 = vadd.f32 %v810, %v811
    %vm813 = vcmask 253952
    %814 = vst.msk [vmem:[#allocation2] sm:$0x1] %vm813, %v812
    %v815 = vld [vmem:[#allocation16] sm:$0xff]
    %v816 = vld [vmem:[#allocation16 + $0x8] sm:$0xff]
    %v817 = vld [vmem:[#allocation16 + $0x10] sm:$0xff]
    %v818 = vld [vmem:[#allocation16 + $0x18] sm:$0xff]
    %v819 = vld [vmem:[%s18] sm:$0x1]
    %v821 = vsel %vm489, %v812, 0
    %823 = vmatpush.msra.mxu0 0.0
    %824 = vmatpush.msra.mxu0 0.0
    %825 = vmatpush.msra.mxu0 0.0
    %826 = vmatpush.msra.mxu0 0.0
    %827 = vmatpush.msra.mxu0 0.0
    %828 = vmatpush.msra.mxu0 0.0
    %829 = vmatpush.msra.mxu0 0.0
    %830 = vmatpush.msra.mxu0 0.0
    %831 = vmatpush.msra.mxu0 0.0
    %832 = vmatpush.msra.mxu0 0.0
    %833 = vmatpush.msra.mxu0 0.0
    %834 = vmatpush.msra.mxu0 0.0
    %835 = vmatpush.msra.mxu0 %v818
    %836 = vmatpush.msra.mxu0 %v817
    %837 = vmatpush.msra.mxu0 %v816
    %838 = vmatpush.msra.mxu0 %v815
    %839 = vmatmul.f32.gmra.mxu0 %v821
    %v840 = vpop.f32.mrf.mxu0
    %v841 = vadd.f32 %v819, %v840
    %842 = vdwg.mxu0
    %v843 = vld [vmem:[#allocation17] sm:$0xff]
    %v844 = vld [vmem:[#allocation17 + $0x8] sm:$0xff]
    %v845 = vld [vmem:[#allocation17 + $0x10] sm:$0xff]
    %v846 = vld [vmem:[#allocation17 + $0x18] sm:$0xff]
    %v847 = vld [vmem:[%s19] sm:$0x1]
    %848 = vmatpush.msra.mxu0 0.0
    %849 = vmatpush.msra.mxu0 0.0
    %850 = vmatpush.msra.mxu0 0.0
    %851 = vmatpush.msra.mxu0 0.0
    %852 = vmatpush.msra.mxu0 0.0
    %853 = vmatpush.msra.mxu0 0.0
    %854 = vmatpush.msra.mxu0 0.0
    %855 = vmatpush.msra.mxu0 0.0
    %856 = vmatpush.msra.mxu0 0.0
    %857 = vmatpush.msra.mxu0 0.0
    %858 = vmatpush.msra.mxu0 0.0
    %859 = vmatpush.msra.mxu0 0.0
    %860 = vmatpush.msra.mxu0 %v846
    %861 = vmatpush.msra.mxu0 %v845
    %862 = vmatpush.msra.mxu0 %v844
    %863 = vmatpush.msra.mxu0 %v843
    %864 = vmatmul.f32.gmra.mxu0 %v821
    %v865 = vpop.f32.mrf.mxu0
    %v866 = vadd.f32 %v847, %v865
    %867 = vdwg.mxu0
    %v868 = vld [vmem:[#allocation19] sm:$0xff]
    %v869 = vld [vmem:[#allocation19 + $0x8] sm:$0xff]
    %v870 = vld [vmem:[#allocation19 + $0x10] sm:$0xff]
    %v871 = vld [vmem:[#allocation19 + $0x18] sm:$0xff]
    %v872 = vld [vmem:[%s20] sm:$0x1]
    %873 = vmatpush.msra.mxu0 0.0
    %874 = vmatpush.msra.mxu0 0.0
    %875 = vmatpush.msra.mxu0 0.0
    %876 = vmatpush.msra.mxu0 0.0
    %877 = vmatpush.msra.mxu0 0.0
    %878 = vmatpush.msra.mxu0 0.0
    %879 = vmatpush.msra.mxu0 0.0
    %880 = vmatpush.msra.mxu0 0.0
    %881 = vmatpush.msra.mxu0 0.0
    %882 = vmatpush.msra.mxu0 0.0
    %883 = vmatpush.msra.mxu0 0.0
    %884 = vmatpush.msra.mxu0 0.0
    %885 = vmatpush.msra.mxu0 %v871
    %886 = vmatpush.msra.mxu0 %v870
    %887 = vmatpush.msra.mxu0 %v869
    %888 = vmatpush.msra.mxu0 %v868
    %889 = vmatmul.f32.gmra.mxu0 %v821
    %v890 = vpop.f32.mrf.mxu0
    %v891 = vadd.f32 %v872, %v890
    %892 = vdwg.mxu0
    %v894 = vrot.slane %v841, 7
    %v896 = vadd.f32 %v629, %v894
    %v897 = vxor.u32 %v896, 2147483648
    %v898 = vmul.f32 %v897, 1.442695
    %v899 = vpow.pop %v898
    %v900 = vadd.f32 %v899, 1.0
    %v901 = vrcp.pop %v900
    %v902 = vmul.f32 %v900, %v901
    %v903 = vsub.f32 1.0, %v902
    %v904 = vmul.f32 %v901, %v903
    %v905 = vadd.f32 %v901, %v904
    %vm906 = vweird.f32 %v900
    %vm907 = vweird.f32 %v901
    %vm908 = vmor %vm906, %vm907
    %v909 = vsel %vm908, %v901, %v905
    %v910 = vand.u32 2147483647, %v900
    %vm911 = vcmp.eq.f32.partialorder %v910, 8.507059e+37
    %v912 = vand.u32 %v900, 2147483648
    %v913 = vor.u32 1.1754944e-38, %v912
    %v914 = vsel %vm911, %v913, %v909
    %v915 = vmul.f32 1.0, %v914
    %v917 = vrot.slane %v866, 7
    %v919 = vadd.f32 %v657, %v917
    %v920 = vxor.u32 %v919, 2147483648
    %v921 = vmul.f32 %v920, 1.442695
    %v922 = vpow.pop %v921
    %v923 = vadd.f32 %v922, 1.0
    %v924 = vrcp.pop %v923
    %v925 = vmul.f32 %v923, %v924
    %v926 = vsub.f32 1.0, %v925
    %v927 = vmul.f32 %v924, %v926
    %v928 = vadd.f32 %v924, %v927
    %vm929 = vweird.f32 %v923
    %vm930 = vweird.f32 %v924
    %vm931 = vmor %vm929, %vm930
    %v932 = vsel %vm931, %v924, %v928
    %v933 = vand.u32 2147483647, %v923
    %vm934 = vcmp.eq.f32.partialorder %v933, 8.507059e+37
    %v935 = vand.u32 %v923, 2147483648
    %v936 = vor.u32 1.1754944e-38, %v935
    %v937 = vsel %vm934, %v936, %v932
    %v938 = vmul.f32 1.0, %v937
    %v940 = vrot.slane %v891, 7
    %v942 = vmul.f32 %v915, %v940
    %v943 = vadd.f32 %v685, %v942
    %v944 = vtanh.pop %v943
    %v945 = vsub.f32 1.0, %v938
    %v946 = vmul.f32 %v945, %v944
    %v947 = vrot.slane %v812, 7
    %v949 = vmul.f32 %v938, %v947
    %v950 = vadd.f32 %v946, %v949
    %vm951 = vcmask 254977
    %952 = vst.msk [vmem:[#allocation2] sm:$0x2] %vm951, %v950
    %v953 = vld [vmem:[#allocation16] sm:$0xff]
    %v954 = vld [vmem:[#allocation16 + $0x8] sm:$0xff]
    %v955 = vld [vmem:[#allocation16 + $0x10] sm:$0xff]
    %v956 = vld [vmem:[#allocation16 + $0x18] sm:$0xff]
    %v957 = vld [vmem:[%s18] sm:$0x1]
    %v959 = vrot.slane %v950, 1
    %v960 = vsel %vm489, %v959, 0
    %962 = vmatpush.msra.mxu0 0.0
    %963 = vmatpush.msra.mxu0 0.0
    %964 = vmatpush.msra.mxu0 0.0
    %965 = vmatpush.msra.mxu0 0.0
    %966 = vmatpush.msra.mxu0 0.0
    %967 = vmatpush.msra.mxu0 0.0
    %968 = vmatpush.msra.mxu0 0.0
    %969 = vmatpush.msra.mxu0 0.0
    %970 = vmatpush.msra.mxu0 0.0
    %971 = vmatpush.msra.mxu0 0.0
    %972 = vmatpush.msra.mxu0 0.0
    %973 = vmatpush.msra.mxu0 0.0
    %974 = vmatpush.msra.mxu0 %v956
    %975 = vmatpush.msra.mxu0 %v955
    %976 = vmatpush.msra.mxu0 %v954
    %977 = vmatpush.msra.mxu0 %v953
    %978 = vmatmul.f32.gmra.mxu0 %v960
    %v979 = vpop.f32.mrf.mxu0
    %v980 = vadd.f32 %v957, %v979
    %981 = vdwg.mxu0
    %v982 = vld [vmem:[#allocation17] sm:$0xff]
    %v983 = vld [vmem:[#allocation17 + $0x8] sm:$0xff]
    %v984 = vld [vmem:[#allocation17 + $0x10] sm:$0xff]
    %v985 = vld [vmem:[#allocation17 + $0x18] sm:$0xff]
    %v986 = vld [vmem:[%s19] sm:$0x1]
    %987 = vmatpush.msra.mxu0 0.0
    %988 = vmatpush.msra.mxu0 0.0
    %989 = vmatpush.msra.mxu0 0.0
    %990 = vmatpush.msra.mxu0 0.0
    %991 = vmatpush.msra.mxu0 0.0
    %992 = vmatpush.msra.mxu0 0.0
    %993 = vmatpush.msra.mxu0 0.0
    %994 = vmatpush.msra.mxu0 0.0
    %995 = vmatpush.msra.mxu0 0.0
    %996 = vmatpush.msra.mxu0 0.0
    %997 = vmatpush.msra.mxu0 0.0
    %998 = vmatpush.msra.mxu0 0.0
    %999 = vmatpush.msra.mxu0 %v985
    %1000 = vmatpush.msra.mxu0 %v984
    %1001 = vmatpush.msra.mxu0 %v983
    %1002 = vmatpush.msra.mxu0 %v982
    %1003 = vmatmul.f32.gmra.mxu0 %v960
    %v1004 = vpop.f32.mrf.mxu0
    %v1005 = vadd.f32 %v986, %v1004
    %1006 = vdwg.mxu0
    %v1007 = vld [vmem:[#allocation19] sm:$0xff]
    %v1008 = vld [vmem:[#allocation19 + $0x8] sm:$0xff]
    %v1009 = vld [vmem:[#allocation19 + $0x10] sm:$0xff]
    %v1010 = vld [vmem:[#allocation19 + $0x18] sm:$0xff]
    %v1011 = vld [vmem:[%s20] sm:$0x1]
    %1012 = vmatpush.msra.mxu0 0.0
    %1013 = vmatpush.msra.mxu0 0.0
    %1014 = vmatpush.msra.mxu0 0.0
    %1015 = vmatpush.msra.mxu0 0.0
    %1016 = vmatpush.msra.mxu0 0.0
    %1017 = vmatpush.msra.mxu0 0.0
    %1018 = vmatpush.msra.mxu0 0.0
    %1019 = vmatpush.msra.mxu0 0.0
    %1020 = vmatpush.msra.mxu0 0.0
    %1021 = vmatpush.msra.mxu0 0.0
    %1022 = vmatpush.msra.mxu0 0.0
    %1023 = vmatpush.msra.mxu0 0.0
    %1024 = vmatpush.msra.mxu0 %v1010
    %1025 = vmatpush.msra.mxu0 %v1009
    %1026 = vmatpush.msra.mxu0 %v1008
    %1027 = vmatpush.msra.mxu0 %v1007
    %1028 = vmatmul.f32.gmra.mxu0 %v960
    %v1029 = vpop.f32.mrf.mxu0
    %v1030 = vadd.f32 %v1011, %v1029
    %1031 = vdwg.mxu0
    %v1033 = vrot.slane %v980, 6
    %v1035 = vadd.f32 %v629, %v1033
    %v1036 = vxor.u32 %v1035, 2147483648
    %v1037 = vmul.f32 %v1036, 1.442695
    %v1038 = vpow.pop %v1037
    %v1039 = vadd.f32 %v1038, 1.0
    %v1040 = vrcp.pop %v1039
    %v1041 = vmul.f32 %v1039, %v1040
    %v1042 = vsub.f32 1.0, %v1041
    %v1043 = vmul.f32 %v1040, %v1042
    %v1044 = vadd.f32 %v1040, %v1043
    %vm1045 = vweird.f32 %v1039
    %vm1046 = vweird.f32 %v1040
    %vm1047 = vmor %vm1045, %vm1046
    %v1048 = vsel %vm1047, %v1040, %v1044
    %v1049 = vand.u32 2147483647, %v1039
    %vm1050 = vcmp.eq.f32.partialorder %v1049, 8.507059e+37
    %v1051 = vand.u32 %v1039, 2147483648
    %v1052 = vor.u32 1.1754944e-38, %v1051
    %v1053 = vsel %vm1050, %v1052, %v1048
    %v1054 = vmul.f32 1.0, %v1053
    %v1056 = vrot.slane %v1005, 6
    %v1058 = vadd.f32 %v657, %v1056
    %v1059 = vxor.u32 %v1058, 2147483648
    %v1060 = vmul.f32 %v1059, 1.442695
    %v1061 = vpow.pop %v1060
    %v1062 = vadd.f32 %v1061, 1.0
    %v1063 = vrcp.pop %v1062
    %v1064 = vmul.f32 %v1062, %v1063
    %v1065 = vsub.f32 1.0, %v1064
    %v1066 = vmul.f32 %v1063, %v1065
    %v1067 = vadd.f32 %v1063, %v1066
    %vm1068 = vweird.f32 %v1062
    %vm1069 = vweird.f32 %v1063
    %vm1070 = vmor %vm1068, %vm1069
    %v1071 = vsel %vm1070, %v1063, %v1067
    %v1072 = vand.u32 2147483647, %v1062
    %vm1073 = vcmp.eq.f32.partialorder %v1072, 8.507059e+37
    %v1074 = vand.u32 %v1062, 2147483648
    %v1075 = vor.u32 1.1754944e-38, %v1074
    %v1076 = vsel %vm1073, %v1075, %v1071
    %v1077 = vmul.f32 1.0, %v1076
    %v1079 = vrot.slane %v1030, 6
    %v1081 = vmul.f32 %v1054, %v1079
    %v1082 = vadd.f32 %v685, %v1081
    %v1083 = vtanh.pop %v1082
    %v1084 = vsub.f32 1.0, %v1077
    %v1085 = vmul.f32 %v1084, %v1083
    %v1086 = vrot.slane %v950, 7
    %v1088 = vmul.f32 %v1077, %v1086
    %v1089 = vadd.f32 %v1085, %v1088
    %vm1090 = vcmask 256002
    %1091 = vst.msk [vmem:[#allocation2] sm:$0x4] %vm1090, %v1089
    %v1092 = vld [vmem:[#allocation16] sm:$0xff]
    %v1093 = vld [vmem:[#allocation16 + $0x8] sm:$0xff]
    %v1094 = vld [vmem:[#allocation16 + $0x10] sm:$0xff]
    %v1095 = vld [vmem:[#allocation16 + $0x18] sm:$0xff]
    %v1096 = vld [vmem:[%s18] sm:$0x1]
    %v1098 = vrot.slane %v1089, 2
    %v1099 = vsel %vm489, %v1098, 0
    %1101 = vmatpush.msra.mxu0 0.0
    %1102 = vmatpush.msra.mxu0 0.0
    %1103 = vmatpush.msra.mxu0 0.0
    %1104 = vmatpush.msra.mxu0 0.0
    %1105 = vmatpush.msra.mxu0 0.0
    %1106 = vmatpush.msra.mxu0 0.0
    %1107 = vmatpush.msra.mxu0 0.0
    %1108 = vmatpush.msra.mxu0 0.0
    %1109 = vmatpush.msra.mxu0 0.0
    %1110 = vmatpush.msra.mxu0 0.0
    %1111 = vmatpush.msra.mxu0 0.0
    %1112 = vmatpush.msra.mxu0 0.0
    %1113 = vmatpush.msra.mxu0 %v1095
    %1114 = vmatpush.msra.mxu0 %v1094
    %1115 = vmatpush.msra.mxu0 %v1093
    %1116 = vmatpush.msra.mxu0 %v1092
    %1117 = vmatmul.f32.gmra.mxu0 %v1099
    %v1118 = vpop.f32.mrf.mxu0
    %v1119 = vadd.f32 %v1096, %v1118
    %1120 = vdwg.mxu0
    %v1121 = vld [vmem:[#allocation17] sm:$0xff]
    %v1122 = vld [vmem:[#allocation17 + $0x8] sm:$0xff]
    %v1123 = vld [vmem:[#allocation17 + $0x10] sm:$0xff]
    %v1124 = vld [vmem:[#allocation17 + $0x18] sm:$0xff]
    %v1125 = vld [vmem:[%s19] sm:$0x1]
    %1126 = vmatpush.msra.mxu0 0.0
    %1127 = vmatpush.msra.mxu0 0.0
    %1128 = vmatpush.msra.mxu0 0.0
    %1129 = vmatpush.msra.mxu0 0.0
    %1130 = vmatpush.msra.mxu0 0.0
    %1131 = vmatpush.msra.mxu0 0.0
    %1132 = vmatpush.msra.mxu0 0.0
    %1133 = vmatpush.msra.mxu0 0.0
    %1134 = vmatpush.msra.mxu0 0.0
    %1135 = vmatpush.msra.mxu0 0.0
    %1136 = vmatpush.msra.mxu0 0.0
    %1137 = vmatpush.msra.mxu0 0.0
    %1138 = vmatpush.msra.mxu0 %v1124
    %1139 = vmatpush.msra.mxu0 %v1123
    %1140 = vmatpush.msra.mxu0 %v1122
    %1141 = vmatpush.msra.mxu0 %v1121
    %1142 = vmatmul.f32.gmra.mxu0 %v1099
    %v1143 = vpop.f32.mrf.mxu0
    %v1144 = vadd.f32 %v1125, %v1143
    %1145 = vdwg.mxu0
    %v1146 = vld [vmem:[#allocation19] sm:$0xff]
    %v1147 = vld [vmem:[#allocation19 + $0x8] sm:$0xff]
    %v1148 = vld [vmem:[#allocation19 + $0x10] sm:$0xff]
    %v1149 = vld [vmem:[#allocation19 + $0x18] sm:$0xff]
    %v1150 = vld [vmem:[%s20] sm:$0x1]
    %1151 = vmatpush.msra.mxu0 0.0
    %1152 = vmatpush.msra.mxu0 0.0
    %1153 = vmatpush.msra.mxu0 0.0
    %1154 = vmatpush.msra.mxu0 0.0
    %1155 = vmatpush.msra.mxu0 0.0
    %1156 = vmatpush.msra.mxu0 0.0
    %1157 = vmatpush.msra.mxu0 0.0
    %1158 = vmatpush.msra.mxu0 0.0
    %1159 = vmatpush.msra.mxu0 0.0
    %1160 = vmatpush.msra.mxu0 0.0
    %1161 = vmatpush.msra.mxu0 0.0
    %1162 = vmatpush.msra.mxu0 0.0
    %1163 = vmatpush.msra.mxu0 %v1149
    %1164 = vmatpush.msra.mxu0 %v1148
    %1165 = vmatpush.msra.mxu0 %v1147
    %1166 = vmatpush.msra.mxu0 %v1146
    %1167 = vmatmul.f32.gmra.mxu0 %v1099
    %v1168 = vpop.f32.mrf.mxu0
    %v1169 = vadd.f32 %v1150, %v1168
    %1170 = vdwg.mxu0
    %v1172 = vrot.slane %v1119, 5
    %v1174 = vadd.f32 %v629, %v1172
    %v1175 = vxor.u32 %v1174, 2147483648
    %v1176 = vmul.f32 %v1175, 1.442695
    %v1177 = vpow.pop %v1176
    %v1178 = vadd.f32 %v1177, 1.0
    %v1179 = vrcp.pop %v1178
    %v1180 = vmul.f32 %v1178, %v1179
    %v1181 = vsub.f32 1.0, %v1180
    %v1182 = vmul.f32 %v1179, %v1181
    %v1183 = vadd.f32 %v1179, %v1182
    %vm1184 = vweird.f32 %v1178
    %vm1185 = vweird.f32 %v1179
    %vm1186 = vmor %vm1184, %vm1185
    %v1187 = vsel %vm1186, %v1179, %v1183
    %v1188 = vand.u32 2147483647, %v1178
    %vm1189 = vcmp.eq.f32.partialorder %v1188, 8.507059e+37
    %v1190 = vand.u32 %v1178, 2147483648
    %v1191 = vor.u32 1.1754944e-38, %v1190
    %v1192 = vsel %vm1189, %v1191, %v1187
    %v1193 = vmul.f32 1.0, %v1192
    %v1195 = vrot.slane %v1144, 5
    %v1197 = vadd.f32 %v657, %v1195
    %v1198 = vxor.u32 %v1197, 2147483648
    %v1199 = vmul.f32 %v1198, 1.442695
    %v1200 = vpow.pop %v1199
    %v1201 = vadd.f32 %v1200, 1.0
    %v1202 = vrcp.pop %v1201
    %v1203 = vmul.f32 %v1201, %v1202
    %v1204 = vsub.f32 1.0, %v1203
    %v1205 = vmul.f32 %v1202, %v1204
    %v1206 = vadd.f32 %v1202, %v1205
    %vm1207 = vweird.f32 %v1201
    %vm1208 = vweird.f32 %v1202
    %vm1209 = vmor %vm1207, %vm1208
    %v1210 = vsel %vm1209, %v1202, %v1206
    %v1211 = vand.u32 2147483647, %v1201
    %vm1212 = vcmp.eq.f32.partialorder %v1211, 8.507059e+37
    %v1213 = vand.u32 %v1201, 2147483648
    %v1214 = vor.u32 1.1754944e-38, %v1213
    %v1215 = vsel %vm1212, %v1214, %v1210
    %v1216 = vmul.f32 1.0, %v1215
    %v1218 = vrot.slane %v1169, 5
    %v1220 = vmul.f32 %v1193, %v1218
    %v1221 = vadd.f32 %v685, %v1220
    %v1222 = vtanh.pop %v1221
    %v1223 = vsub.f32 1.0, %v1216
    %v1224 = vmul.f32 %v1223, %v1222
    %v1225 = vrot.slane %v1089, 7
    %v1227 = vmul.f32 %v1216, %v1225
    %v1228 = vadd.f32 %v1224, %v1227
    %vm1229 = vcmask 257027
    %1230 = vst.msk [vmem:[#allocation2] sm:$0x8] %vm1229, %v1228
    %v1231 = vld [vmem:[#allocation16] sm:$0xff]
    %v1232 = vld [vmem:[#allocation16 + $0x8] sm:$0xff]
    %v1233 = vld [vmem:[#allocation16 + $0x10] sm:$0xff]
    %v1234 = vld [vmem:[#allocation16 + $0x18] sm:$0xff]
    %v1235 = vld [vmem:[%s18] sm:$0x1]
    %v1237 = vrot.slane %v1228, 3
    %v1238 = vsel %vm489, %v1237, 0
    %1240 = vmatpush.msra.mxu0 0.0
    %1241 = vmatpush.msra.mxu0 0.0
    %1242 = vmatpush.msra.mxu0 0.0
    %1243 = vmatpush.msra.mxu0 0.0
    %1244 = vmatpush.msra.mxu0 0.0
    %1245 = vmatpush.msra.mxu0 0.0
    %1246 = vmatpush.msra.mxu0 0.0
    %1247 = vmatpush.msra.mxu0 0.0
    %1248 = vmatpush.msra.mxu0 0.0
    %1249 = vmatpush.msra.mxu0 0.0
    %1250 = vmatpush.msra.mxu0 0.0
    %1251 = vmatpush.msra.mxu0 0.0
    %1252 = vmatpush.msra.mxu0 %v1234
    %1253 = vmatpush.msra.mxu0 %v1233
    %1254 = vmatpush.msra.mxu0 %v1232
    %1255 = vmatpush.msra.mxu0 %v1231
    %1256 = vmatmul.f32.gmra.mxu0 %v1238
    %v1257 = vpop.f32.mrf.mxu0
    %v1258 = vadd.f32 %v1235, %v1257
    %1259 = vdwg.mxu0
    %v1260 = vld [vmem:[#allocation17] sm:$0xff]
    %v1261 = vld [vmem:[#allocation17 + $0x8] sm:$0xff]
    %v1262 = vld [vmem:[#allocation17 + $0x10] sm:$0xff]
    %v1263 = vld [vmem:[#allocation17 + $0x18] sm:$0xff]
    %v1264 = vld [vmem:[%s19] sm:$0x1]
    %1265 = vmatpush.msra.mxu0 0.0
    %1266 = vmatpush.msra.mxu0 0.0
    %1267 = vmatpush.msra.mxu0 0.0
    %1268 = vmatpush.msra.mxu0 0.0
    %1269 = vmatpush.msra.mxu0 0.0
    %1270 = vmatpush.msra.mxu0 0.0
    %1271 = vmatpush.msra.mxu0 0.0
    %1272 = vmatpush.msra.mxu0 0.0
    %1273 = vmatpush.msra.mxu0 0.0
    %1274 = vmatpush.msra.mxu0 0.0
    %1275 = vmatpush.msra.mxu0 0.0
    %1276 = vmatpush.msra.mxu0 0.0
    %1277 = vmatpush.msra.mxu0 %v1263
    %1278 = vmatpush.msra.mxu0 %v1262
    %1279 = vmatpush.msra.mxu0 %v1261
    %1280 = vmatpush.msra.mxu0 %v1260
    %1281 = vmatmul.f32.gmra.mxu0 %v1238
    %v1282 = vpop.f32.mrf.mxu0
    %v1283 = vadd.f32 %v1264, %v1282
    %1284 = vdwg.mxu0
    %v1285 = vld [vmem:[#allocation19] sm:$0xff]
    %v1286 = vld [vmem:[#allocation19 + $0x8] sm:$0xff]
    %v1287 = vld [vmem:[#allocation19 + $0x10] sm:$0xff]
    %v1288 = vld [vmem:[#allocation19 + $0x18] sm:$0xff]
    %v1289 = vld [vmem:[%s20] sm:$0x1]
    %1290 = vmatpush.msra.mxu0 0.0
    %1291 = vmatpush.msra.mxu0 0.0
    %1292 = vmatpush.msra.mxu0 0.0
    %1293 = vmatpush.msra.mxu0 0.0
    %1294 = vmatpush.msra.mxu0 0.0
    %1295 = vmatpush.msra.mxu0 0.0
    %1296 = vmatpush.msra.mxu0 0.0
    %1297 = vmatpush.msra.mxu0 0.0
    %1298 = vmatpush.msra.mxu0 0.0
    %1299 = vmatpush.msra.mxu0 0.0
    %1300 = vmatpush.msra.mxu0 0.0
    %1301 = vmatpush.msra.mxu0 0.0
    %1302 = vmatpush.msra.mxu0 %v1288
    %1303 = vmatpush.msra.mxu0 %v1287
    %1304 = vmatpush.msra.mxu0 %v1286
    %1305 = vmatpush.msra.mxu0 %v1285
    %1306 = vmatmul.f32.gmra.mxu0 %v1238
    %v1307 = vpop.f32.mrf.mxu0
    %v1308 = vadd.f32 %v1289, %v1307
    %1309 = vdwg.mxu0
    %v1311 = vrot.slane %v1258, 4
    %v1313 = vadd.f32 %v629, %v1311
    %v1314 = vxor.u32 %v1313, 2147483648
    %v1315 = vmul.f32 %v1314, 1.442695
    %v1316 = vpow.pop %v1315
    %v1317 = vadd.f32 %v1316, 1.0
    %v1318 = vrcp.pop %v1317
    %v1319 = vmul.f32 %v1317, %v1318
    %v1320 = vsub.f32 1.0, %v1319
    %v1321 = vmul.f32 %v1318, %v1320
    %v1322 = vadd.f32 %v1318, %v1321
    %vm1323 = vweird.f32 %v1317
    %vm1324 = vweird.f32 %v1318
    %vm1325 = vmor %vm1323, %vm1324
    %v1326 = vsel %vm1325, %v1318, %v1322
    %v1327 = vand.u32 2147483647, %v1317
    %vm1328 = vcmp.eq.f32.partialorder %v1327, 8.507059e+37
    %v1329 = vand.u32 %v1317, 2147483648
    %v1330 = vor.u32 1.1754944e-38, %v1329
    %v1331 = vsel %vm1328, %v1330, %v1326
    %v1332 = vmul.f32 1.0, %v1331
    %v1334 = vrot.slane %v1283, 4
    %v1336 = vadd.f32 %v657, %v1334
    %v1337 = vxor.u32 %v1336, 2147483648
    %v1338 = vmul.f32 %v1337, 1.442695
    %v1339 = vpow.pop %v1338
    %v1340 = vadd.f32 %v1339, 1.0
    %v1341 = vrcp.pop %v1340
    %v1342 = vmul.f32 %v1340, %v1341
    %v1343 = vsub.f32 1.0, %v1342
    %v1344 = vmul.f32 %v1341, %v1343
    %v1345 = vadd.f32 %v1341, %v1344
    %vm1346 = vweird.f32 %v1340
    %vm1347 = vweird.f32 %v1341
    %vm1348 = vmor %vm1346, %vm1347
    %v1349 = vsel %vm1348, %v1341, %v1345
    %v1350 = vand.u32 2147483647, %v1340
    %vm1351 = vcmp.eq.f32.partialorder %v1350, 8.507059e+37
    %v1352 = vand.u32 %v1340, 2147483648
    %v1353 = vor.u32 1.1754944e-38, %v1352
    %v1354 = vsel %vm1351, %v1353, %v1349
    %v1355 = vmul.f32 1.0, %v1354
    %v1357 = vrot.slane %v1308, 4
    %v1359 = vmul.f32 %v1332, %v1357
    %v1360 = vadd.f32 %v685, %v1359
    %v1361 = vtanh.pop %v1360
    %v1362 = vsub.f32 1.0, %v1355
    %v1363 = vmul.f32 %v1362, %v1361
    %v1364 = vrot.slane %v1228, 7
    %v1366 = vmul.f32 %v1355, %v1364
    %v1367 = vadd.f32 %v1363, %v1366
    %vm1368 = vcmask 258052
    %1369 = vst.msk [vmem:[#allocation2] sm:$0x10] %vm1368, %v1367
    %v1370 = vld [vmem:[#allocation16] sm:$0xff]
    %v1371 = vld [vmem:[#allocation16 + $0x8] sm:$0xff]
    %v1372 = vld [vmem:[#allocation16 + $0x10] sm:$0xff]
    %v1373 = vld [vmem:[#allocation16 + $0x18] sm:$0xff]
    %v1374 = vld [vmem:[%s18] sm:$0x1]
    %v1376 = vrot.slane %v1367, 4
    %v1377 = vsel %vm489, %v1376, 0
    %1379 = vmatpush.msra.mxu0 0.0
    %1380 = vmatpush.msra.mxu0 0.0
    %1381 = vmatpush.msra.mxu0 0.0
    %1382 = vmatpush.msra.mxu0 0.0
    %1383 = vmatpush.msra.mxu0 0.0
    %1384 = vmatpush.msra.mxu0 0.0
    %1385 = vmatpush.msra.mxu0 0.0
    %1386 = vmatpush.msra.mxu0 0.0
    %1387 = vmatpush.msra.mxu0 0.0
    %1388 = vmatpush.msra.mxu0 0.0
    %1389 = vmatpush.msra.mxu0 0.0
    %1390 = vmatpush.msra.mxu0 0.0
    %1391 = vmatpush.msra.mxu0 %v1373
    %1392 = vmatpush.msra.mxu0 %v1372
    %1393 = vmatpush.msra.mxu0 %v1371
    %1394 = vmatpush.msra.mxu0 %v1370
    %1395 = vmatmul.f32.gmra.mxu0 %v1377
    %v1396 = vpop.f32.mrf.mxu0
    %v1397 = vadd.f32 %v1374, %v1396
    %1398 = vdwg.mxu0
    %v1399 = vld [vmem:[#allocation17] sm:$0xff]
    %v1400 = vld [vmem:[#allocation17 + $0x8] sm:$0xff]
    %v1401 = vld [vmem:[#allocation17 + $0x10] sm:$0xff]
    %v1402 = vld [vmem:[#allocation17 + $0x18] sm:$0xff]
    %v1403 = vld [vmem:[%s19] sm:$0x1]
    %1404 = vmatpush.msra.mxu0 0.0
    %1405 = vmatpush.msra.mxu0 0.0
    %1406 = vmatpush.msra.mxu0 0.0
    %1407 = vmatpush.msra.mxu0 0.0
    %1408 = vmatpush.msra.mxu0 0.0
    %1409 = vmatpush.msra.mxu0 0.0
    %1410 = vmatpush.msra.mxu0 0.0
    %1411 = vmatpush.msra.mxu0 0.0
    %1412 = vmatpush.msra.mxu0 0.0
    %1413 = vmatpush.msra.mxu0 0.0
    %1414 = vmatpush.msra.mxu0 0.0
    %1415 = vmatpush.msra.mxu0 0.0
    %1416 = vmatpush.msra.mxu0 %v1402
    %1417 = vmatpush.msra.mxu0 %v1401
    %1418 = vmatpush.msra.mxu0 %v1400
    %1419 = vmatpush.msra.mxu0 %v1399
    %1420 = vmatmul.f32.gmra.mxu0 %v1377
    %v1421 = vpop.f32.mrf.mxu0
    %v1422 = vadd.f32 %v1403, %v1421
    %1423 = vdwg.mxu0
    %v1424 = vld [vmem:[#allocation19] sm:$0xff]
    %v1425 = vld [vmem:[#allocation19 + $0x8] sm:$0xff]
    %v1426 = vld [vmem:[#allocation19 + $0x10] sm:$0xff]
    %v1427 = vld [vmem:[#allocation19 + $0x18] sm:$0xff]
    %v1428 = vld [vmem:[%s20] sm:$0x1]
    %1429 = vmatpush.msra.mxu0 0.0
    %1430 = vmatpush.msra.mxu0 0.0
    %1431 = vmatpush.msra.mxu0 0.0
    %1432 = vmatpush.msra.mxu0 0.0
    %1433 = vmatpush.msra.mxu0 0.0
    %1434 = vmatpush.msra.mxu0 0.0
    %1435 = vmatpush.msra.mxu0 0.0
    %1436 = vmatpush.msra.mxu0 0.0
    %1437 = vmatpush.msra.mxu0 0.0
    %1438 = vmatpush.msra.mxu0 0.0
    %1439 = vmatpush.msra.mxu0 0.0
    %1440 = vmatpush.msra.mxu0 0.0
    %1441 = vmatpush.msra.mxu0 %v1427
    %1442 = vmatpush.msra.mxu0 %v1426
    %1443 = vmatpush.msra.mxu0 %v1425
    %1444 = vmatpush.msra.mxu0 %v1424
    %1445 = vmatmul.f32.gmra.mxu0 %v1377
    %v1446 = vpop.f32.mrf.mxu0
    %v1447 = vadd.f32 %v1428, %v1446
    %1448 = vdwg.mxu0
    %v1450 = vrot.slane %v1397, 3
    %v1452 = vadd.f32 %v629, %v1450
    %v1453 = vxor.u32 %v1452, 2147483648
    %v1454 = vmul.f32 %v1453, 1.442695
    %v1455 = vpow.pop %v1454
    %v1456 = vadd.f32 %v1455, 1.0
    %v1457 = vrcp.pop %v1456
    %v1458 = vmul.f32 %v1456, %v1457
    %v1459 = vsub.f32 1.0, %v1458
    %v1460 = vmul.f32 %v1457, %v1459
    %v1461 = vadd.f32 %v1457, %v1460
    %vm1462 = vweird.f32 %v1456
    %vm1463 = vweird.f32 %v1457
    %vm1464 = vmor %vm1462, %vm1463
    %v1465 = vsel %vm1464, %v1457, %v1461
    %v1466 = vand.u32 2147483647, %v1456
    %vm1467 = vcmp.eq.f32.partialorder %v1466, 8.507059e+37
    %v1468 = vand.u32 %v1456, 2147483648
    %v1469 = vor.u32 1.1754944e-38, %v1468
    %v1470 = vsel %vm1467, %v1469, %v1465
    %v1471 = vmul.f32 1.0, %v1470
    %v1473 = vrot.slane %v1422, 3
    %v1475 = vadd.f32 %v657, %v1473
    %v1476 = vxor.u32 %v1475, 2147483648
    %v1477 = vmul.f32 %v1476, 1.442695
    %v1478 = vpow.pop %v1477
    %v1479 = vadd.f32 %v1478, 1.0
    %v1480 = vrcp.pop %v1479
    %v1481 = vmul.f32 %v1479, %v1480
    %v1482 = vsub.f32 1.0, %v1481
    %v1483 = vmul.f32 %v1480, %v1482
    %v1484 = vadd.f32 %v1480, %v1483
    %vm1485 = vweird.f32 %v1479
    %vm1486 = vweird.f32 %v1480
    %vm1487 = vmor %vm1485, %vm1486
    %v1488 = vsel %vm1487, %v1480, %v1484
    %v1489 = vand.u32 2147483647, %v1479
    %vm1490 = vcmp.eq.f32.partialorder %v1489, 8.507059e+37
    %v1491 = vand.u32 %v1479, 2147483648
    %v1492 = vor.u32 1.1754944e-38, %v1491
    %v1493 = vsel %vm1490, %v1492, %v1488
    %v1494 = vmul.f32 1.0, %v1493
    %v1496 = vrot.slane %v1447, 3
    %v1498 = vmul.f32 %v1471, %v1496
    %v1499 = vadd.f32 %v685, %v1498
    %v1500 = vtanh.pop %v1499
    %v1501 = vsub.f32 1.0, %v1494
    %v1502 = vmul.f32 %v1501, %v1500
    %v1503 = vrot.slane %v1367, 7
    %v1505 = vmul.f32 %v1494, %v1503
    %v1506 = vadd.f32 %v1502, %v1505
    %vm1507 = vcmask 259077
    %1508 = vst.msk [vmem:[#allocation2] sm:$0x20] %vm1507, %v1506
    %v1509 = vld [vmem:[#allocation16] sm:$0xff]
    %v1510 = vld [vmem:[#allocation16 + $0x8] sm:$0xff]
    %v1511 = vld [vmem:[#allocation16 + $0x10] sm:$0xff]
    %v1512 = vld [vmem:[#allocation16 + $0x18] sm:$0xff]
    %v1513 = vld [vmem:[%s18] sm:$0x1]
    %v1515 = vrot.slane %v1506, 5
    %v1516 = vsel %vm489, %v1515, 0
    %1518 = vmatpush.msra.mxu0 0.0
    %1519 = vmatpush.msra.mxu0 0.0
    %1520 = vmatpush.msra.mxu0 0.0
    %1521 = vmatpush.msra.mxu0 0.0
    %1522 = vmatpush.msra.mxu0 0.0
    %1523 = vmatpush.msra.mxu0 0.0
    %1524 = vmatpush.msra.mxu0 0.0
    %1525 = vmatpush.msra.mxu0 0.0
    %1526 = vmatpush.msra.mxu0 0.0
    %1527 = vmatpush.msra.mxu0 0.0
    %1528 = vmatpush.msra.mxu0 0.0
    %1529 = vmatpush.msra.mxu0 0.0
    %1530 = vmatpush.msra.mxu0 %v1512
    %1531 = vmatpush.msra.mxu0 %v1511
    %1532 = vmatpush.msra.mxu0 %v1510
    %1533 = vmatpush.msra.mxu0 %v1509
    %1534 = vmatmul.f32.gmra.mxu0 %v1516
    %v1535 = vpop.f32.mrf.mxu0
    %v1536 = vadd.f32 %v1513, %v1535
    %1537 = vdwg.mxu0
    %v1538 = vld [vmem:[#allocation17] sm:$0xff]
    %v1539 = vld [vmem:[#allocation17 + $0x8] sm:$0xff]
    %v1540 = vld [vmem:[#allocation17 + $0x10] sm:$0xff]
    %v1541 = vld [vmem:[#allocation17 + $0x18] sm:$0xff]
    %v1542 = vld [vmem:[%s19] sm:$0x1]
    %1543 = vmatpush.msra.mxu0 0.0
    %1544 = vmatpush.msra.mxu0 0.0
    %1545 = vmatpush.msra.mxu0 0.0
    %1546 = vmatpush.msra.mxu0 0.0
    %1547 = vmatpush.msra.mxu0 0.0
    %1548 = vmatpush.msra.mxu0 0.0
    %1549 = vmatpush.msra.mxu0 0.0
    %1550 = vmatpush.msra.mxu0 0.0
    %1551 = vmatpush.msra.mxu0 0.0
    %1552 = vmatpush.msra.mxu0 0.0
    %1553 = vmatpush.msra.mxu0 0.0
    %1554 = vmatpush.msra.mxu0 0.0
    %1555 = vmatpush.msra.mxu0 %v1541
    %1556 = vmatpush.msra.mxu0 %v1540
    %1557 = vmatpush.msra.mxu0 %v1539
    %1558 = vmatpush.msra.mxu0 %v1538
    %1559 = vmatmul.f32.gmra.mxu0 %v1516
    %v1560 = vpop.f32.mrf.mxu0
    %v1561 = vadd.f32 %v1542, %v1560
    %1562 = vdwg.mxu0
    %v1563 = vld [vmem:[#allocation19] sm:$0xff]
    %v1564 = vld [vmem:[#allocation19 + $0x8] sm:$0xff]
    %v1565 = vld [vmem:[#allocation19 + $0x10] sm:$0xff]
    %v1566 = vld [vmem:[#allocation19 + $0x18] sm:$0xff]
    %v1567 = vld [vmem:[%s20] sm:$0x1]
    %1568 = vmatpush.msra.mxu0 0.0
    %1569 = vmatpush.msra.mxu0 0.0
    %1570 = vmatpush.msra.mxu0 0.0
    %1571 = vmatpush.msra.mxu0 0.0
    %1572 = vmatpush.msra.mxu0 0.0
    %1573 = vmatpush.msra.mxu0 0.0
    %1574 = vmatpush.msra.mxu0 0.0
    %1575 = vmatpush.msra.mxu0 0.0
    %1576 = vmatpush.msra.mxu0 0.0
    %1577 = vmatpush.msra.mxu0 0.0
    %1578 = vmatpush.msra.mxu0 0.0
    %1579 = vmatpush.msra.mxu0 0.0
    %1580 = vmatpush.msra.mxu0 %v1566
    %1581 = vmatpush.msra.mxu0 %v1565
    %1582 = vmatpush.msra.mxu0 %v1564
    %1583 = vmatpush.msra.mxu0 %v1563
    %1584 = vmatmul.f32.gmra.mxu0 %v1516
    %v1585 = vpop.f32.mrf.mxu0
    %v1586 = vadd.f32 %v1567, %v1585
    %1587 = vdwg.mxu0
    %v1589 = vrot.slane %v1536, 2
    %v1591 = vadd.f32 %v629, %v1589
    %v1592 = vxor.u32 %v1591, 2147483648
    %v1593 = vmul.f32 %v1592, 1.442695
    %v1594 = vpow.pop %v1593
    %v1595 = vadd.f32 %v1594, 1.0
    %v1596 = vrcp.pop %v1595
    %v1597 = vmul.f32 %v1595, %v1596
    %v1598 = vsub.f32 1.0, %v1597
    %v1599 = vmul.f32 %v1596, %v1598
    %v1600 = vadd.f32 %v1596, %v1599
    %vm1601 = vweird.f32 %v1595
    %vm1602 = vweird.f32 %v1596
    %vm1603 = vmor %vm1601, %vm1602
    %v1604 = vsel %vm1603, %v1596, %v1600
    %v1605 = vand.u32 2147483647, %v1595
    %vm1606 = vcmp.eq.f32.partialorder %v1605, 8.507059e+37
    %v1607 = vand.u32 %v1595, 2147483648
    %v1608 = vor.u32 1.1754944e-38, %v1607
    %v1609 = vsel %vm1606, %v1608, %v1604
    %v1610 = vmul.f32 1.0, %v1609
    %v1612 = vrot.slane %v1561, 2
    %v1614 = vadd.f32 %v657, %v1612
    %v1615 = vxor.u32 %v1614, 2147483648
    %v1616 = vmul.f32 %v1615, 1.442695
    %v1617 = vpow.pop %v1616
    %v1618 = vadd.f32 %v1617, 1.0
    %v1619 = vrcp.pop %v1618
    %v1620 = vmul.f32 %v1618, %v1619
    %v1621 = vsub.f32 1.0, %v1620
    %v1622 = vmul.f32 %v1619, %v1621
    %v1623 = vadd.f32 %v1619, %v1622
    %vm1624 = vweird.f32 %v1618
    %vm1625 = vweird.f32 %v1619
    %vm1626 = vmor %vm1624, %vm1625
    %v1627 = vsel %vm1626, %v1619, %v1623
    %v1628 = vand.u32 2147483647, %v1618
    %vm1629 = vcmp.eq.f32.partialorder %v1628, 8.507059e+37
    %v1630 = vand.u32 %v1618, 2147483648
    %v1631 = vor.u32 1.1754944e-38, %v1630
    %v1632 = vsel %vm1629, %v1631, %v1627
    %v1633 = vmul.f32 1.0, %v1632
    %v1635 = vrot.slane %v1586, 2
    %v1637 = vmul.f32 %v1610, %v1635
    %v1638 = vadd.f32 %v685, %v1637
    %v1639 = vtanh.pop %v1638
    %v1640 = vsub.f32 1.0, %v1633
    %v1641 = vmul.f32 %v1640, %v1639
    %v1642 = vrot.slane %v1506, 7
    %v1644 = vmul.f32 %v1633, %v1642
    %v1645 = vadd.f32 %v1641, %v1644
    %vm1646 = vcmask 260102
    %1647 = vst.msk [vmem:[#allocation2] sm:$0x40] %vm1646, %v1645
    %v1648 = vld [vmem:[#allocation16] sm:$0xff]
    %v1649 = vld [vmem:[#allocation16 + $0x8] sm:$0xff]
    %v1650 = vld [vmem:[#allocation16 + $0x10] sm:$0xff]
    %v1651 = vld [vmem:[#allocation16 + $0x18] sm:$0xff]
    %v1652 = vld [vmem:[%s18] sm:$0x1]
    %v1654 = vrot.slane %v1645, 6
    %v1655 = vsel %vm489, %v1654, 0
    %1657 = vmatpush.msra.mxu0 0.0
    %1658 = vmatpush.msra.mxu0 0.0
    %1659 = vmatpush.msra.mxu0 0.0
    %1660 = vmatpush.msra.mxu0 0.0
    %1661 = vmatpush.msra.mxu0 0.0
    %1662 = vmatpush.msra.mxu0 0.0
    %1663 = vmatpush.msra.mxu0 0.0
    %1664 = vmatpush.msra.mxu0 0.0
    %1665 = vmatpush.msra.mxu0 0.0
    %1666 = vmatpush.msra.mxu0 0.0
    %1667 = vmatpush.msra.mxu0 0.0
    %1668 = vmatpush.msra.mxu0 0.0
    %1669 = vmatpush.msra.mxu0 %v1651
    %1670 = vmatpush.msra.mxu0 %v1650
    %1671 = vmatpush.msra.mxu0 %v1649
    %1672 = vmatpush.msra.mxu0 %v1648
    %1673 = vmatmul.f32.gmra.mxu0 %v1655
    %v1674 = vpop.f32.mrf.mxu0
    %v1675 = vadd.f32 %v1652, %v1674
    %1676 = vdwg.mxu0
    %v1677 = vld [vmem:[#allocation17] sm:$0xff]
    %v1678 = vld [vmem:[#allocation17 + $0x8] sm:$0xff]
    %v1679 = vld [vmem:[#allocation17 + $0x10] sm:$0xff]
    %v1680 = vld [vmem:[#allocation17 + $0x18] sm:$0xff]
    %v1681 = vld [vmem:[%s19] sm:$0x1]
    %1682 = vmatpush.msra.mxu0 0.0
    %1683 = vmatpush.msra.mxu0 0.0
    %1684 = vmatpush.msra.mxu0 0.0
    %1685 = vmatpush.msra.mxu0 0.0
    %1686 = vmatpush.msra.mxu0 0.0
    %1687 = vmatpush.msra.mxu0 0.0
    %1688 = vmatpush.msra.mxu0 0.0
    %1689 = vmatpush.msra.mxu0 0.0
    %1690 = vmatpush.msra.mxu0 0.0
    %1691 = vmatpush.msra.mxu0 0.0
    %1692 = vmatpush.msra.mxu0 0.0
    %1693 = vmatpush.msra.mxu0 0.0
    %1694 = vmatpush.msra.mxu0 %v1680
    %1695 = vmatpush.msra.mxu0 %v1679
    %1696 = vmatpush.msra.mxu0 %v1678
    %1697 = vmatpush.msra.mxu0 %v1677
    %1698 = vmatmul.f32.gmra.mxu0 %v1655
    %v1699 = vpop.f32.mrf.mxu0
    %v1700 = vadd.f32 %v1681, %v1699
    %1701 = vdwg.mxu0
    %v1702 = vld [vmem:[#allocation19] sm:$0xff]
    %v1703 = vld [vmem:[#allocation19 + $0x8] sm:$0xff]
    %v1704 = vld [vmem:[#allocation19 + $0x10] sm:$0xff]
    %v1705 = vld [vmem:[#allocation19 + $0x18] sm:$0xff]
    %v1706 = vld [vmem:[%s20] sm:$0x1]
    %1707 = vmatpush.msra.mxu0 0.0
    %1708 = vmatpush.msra.mxu0 0.0
    %1709 = vmatpush.msra.mxu0 0.0
    %1710 = vmatpush.msra.mxu0 0.0
    %1711 = vmatpush.msra.mxu0 0.0
    %1712 = vmatpush.msra.mxu0 0.0
    %1713 = vmatpush.msra.mxu0 0.0
    %1714 = vmatpush.msra.mxu0 0.0
    %1715 = vmatpush.msra.mxu0 0.0
    %1716 = vmatpush.msra.mxu0 0.0
    %1717 = vmatpush.msra.mxu0 0.0
    %1718 = vmatpush.msra.mxu0 0.0
    %1719 = vmatpush.msra.mxu0 %v1705
    %1720 = vmatpush.msra.mxu0 %v1704
    %1721 = vmatpush.msra.mxu0 %v1703
    %1722 = vmatpush.msra.mxu0 %v1702
    %1723 = vmatmul.f32.gmra.mxu0 %v1655
    %v1724 = vpop.f32.mrf.mxu0
    %v1725 = vadd.f32 %v1706, %v1724
    %1726 = vdwg.mxu0
    %v1728 = vrot.slane %v1675, 1
    %v1730 = vadd.f32 %v629, %v1728
    %v1731 = vxor.u32 %v1730, 2147483648
    %v1732 = vmul.f32 %v1731, 1.442695
    %v1733 = vpow.pop %v1732
    %v1734 = vadd.f32 %v1733, 1.0
    %v1735 = vrcp.pop %v1734
    %v1736 = vmul.f32 %v1734, %v1735
    %v1737 = vsub.f32 1.0, %v1736
    %v1738 = vmul.f32 %v1735, %v1737
    %v1739 = vadd.f32 %v1735, %v1738
    %vm1740 = vweird.f32 %v1734
    %vm1741 = vweird.f32 %v1735
    %vm1742 = vmor %vm1740, %vm1741
    %v1743 = vsel %vm1742, %v1735, %v1739
    %v1744 = vand.u32 2147483647, %v1734
    %vm1745 = vcmp.eq.f32.partialorder %v1744, 8.507059e+37
    %v1746 = vand.u32 %v1734, 2147483648
    %v1747 = vor.u32 1.1754944e-38, %v1746
    %v1748 = vsel %vm1745, %v1747, %v1743
    %v1749 = vmul.f32 1.0, %v1748
    %v1751 = vrot.slane %v1700, 1
    %v1753 = vadd.f32 %v657, %v1751
    %v1754 = vxor.u32 %v1753, 2147483648
    %v1755 = vmul.f32 %v1754, 1.442695
    %v1756 = vpow.pop %v1755
    %v1757 = vadd.f32 %v1756, 1.0
    %v1758 = vrcp.pop %v1757
    %v1759 = vmul.f32 %v1757, %v1758
    %v1760 = vsub.f32 1.0, %v1759
    %v1761 = vmul.f32 %v1758, %v1760
    %v1762 = vadd.f32 %v1758, %v1761
    %vm1763 = vweird.f32 %v1757
    %vm1764 = vweird.f32 %v1758
    %vm1765 = vmor %vm1763, %vm1764
    %v1766 = vsel %vm1765, %v1758, %v1762
    %v1767 = vand.u32 2147483647, %v1757
    %vm1768 = vcmp.eq.f32.partialorder %v1767, 8.507059e+37
    %v1769 = vand.u32 %v1757, 2147483648
    %v1770 = vor.u32 1.1754944e-38, %v1769
    %v1771 = vsel %vm1768, %v1770, %v1766
    %v1772 = vmul.f32 1.0, %v1771
    %v1774 = vrot.slane %v1725, 1
    %v1776 = vmul.f32 %v1749, %v1774
    %v1777 = vadd.f32 %v685, %v1776
    %v1778 = vtanh.pop %v1777
    %v1779 = vsub.f32 1.0, %v1772
    %v1780 = vmul.f32 %v1779, %v1778
    %v1781 = vrot.slane %v1645, 7
    %v1783 = vmul.f32 %v1772, %v1781
    %v1784 = vadd.f32 %v1780, %v1783
    %vm1785 = vcmask 261127
    %1786 = vst.msk [vmem:[#allocation2] sm:$0x80] %vm1785, %v1784
    %v1787 = vld [vmem:[#allocation2] sm:$0xff]
    %v1788 = vld [vmem:[#allocation20] sm:$0xff]
    %v1789 = vld [vmem:[#allocation20 + $0x8] sm:$0xff]
    %v1790 = vld [vmem:[#allocation20 + $0x10] sm:$0xff]
    %v1791 = vld [vmem:[#allocation20 + $0x18] sm:$0xff]
    %v1792 = vld [vmem:[%s22] sm:$0x1]
    %v1794 = vperm.slane %v1792, 0
    %v1797 = vsel %vm489, %v1787, 0
    %1799 = vmatpush.msra.mxu0 0.0
    %1800 = vmatpush.msra.mxu0 0.0
    %1801 = vmatpush.msra.mxu0 0.0
    %1802 = vmatpush.msra.mxu0 0.0
    %1803 = vmatpush.msra.mxu0 0.0
    %1804 = vmatpush.msra.mxu0 0.0
    %1805 = vmatpush.msra.mxu0 0.0
    %1806 = vmatpush.msra.mxu0 0.0
    %1807 = vmatpush.msra.mxu0 0.0
    %1808 = vmatpush.msra.mxu0 0.0
    %1809 = vmatpush.msra.mxu0 0.0
    %1810 = vmatpush.msra.mxu0 0.0
    %1811 = vmatpush.msra.mxu0 %v1791
    %1812 = vmatpush.msra.mxu0 %v1790
    %1813 = vmatpush.msra.mxu0 %v1789
    %1814 = vmatpush.msra.mxu0 %v1788
    %1815 = vmatmul.f32.gmra.mxu0 %v1797
    %v1816 = vpop.f32.mrf.mxu0
    %v1817 = vadd.f32 %v1794, %v1816
    %1818 = vdwg.mxu0
    %v1819 = vmax.f32 %v1817, 0.0
    %v1820 = vld [vmem:[#allocation22] sm:$0xff]
    %v1821 = vld [vmem:[#allocation22 + $0x8] sm:$0xff]
    %v1822 = vld [vmem:[#allocation22 + $0x10] sm:$0xff]
    %v1823 = vld [vmem:[#allocation22 + $0x18] sm:$0xff]
    %v1824 = vld [vmem:[%s24] sm:$0x1]
    %v1826 = vperm.slane %v1824, 0
    %v1829 = vsel %vm489, %v1819, 0
    %1831 = vmatpush.msra.mxu0 0.0
    %1832 = vmatpush.msra.mxu0 0.0
    %1833 = vmatpush.msra.mxu0 0.0
    %1834 = vmatpush.msra.mxu0 0.0
    %1835 = vmatpush.msra.mxu0 0.0
    %1836 = vmatpush.msra.mxu0 0.0
    %1837 = vmatpush.msra.mxu0 0.0
    %1838 = vmatpush.msra.mxu0 0.0
    %1839 = vmatpush.msra.mxu0 0.0
    %1840 = vmatpush.msra.mxu0 0.0
    %1841 = vmatpush.msra.mxu0 0.0
    %1842 = vmatpush.msra.mxu0 0.0
    %1843 = vmatpush.msra.mxu0 %v1823
    %1844 = vmatpush.msra.mxu0 %v1822
    %1845 = vmatpush.msra.mxu0 %v1821
    %1846 = vmatpush.msra.mxu0 %v1820
    %1847 = vmatmul.f32.gmra.mxu0 %v1829
    %v1848 = vpop.f32.mrf.mxu0
    %v1849 = vadd.f32 %v1826, %v1848
    %1850 = vdwg.mxu0
    %1851 = vst [vmem:[#allocation23] sm:$0xff] %v1849
    // Predicated region
    $region150: #{tpu_custom_call.1} parent=1 // pred_check
      _
    $region151: #{tpu_custom_call.1} parent=1 // pred_check_branch
      %1853 = sbr.rel (0) target = $region153
    $region152: #{tpu_custom_call.1} parent=1 // pred_region
      %1855 = vsyncadd [#allocation5], 0
      %s1857 = sshll.u32 [#allocation23], 4
      %s1858 = int_to_ptr.vmem [resolvable:$true] %s1857
      %s1859 = sshll.u32 %s25, 4
      %s1860 = int_to_ptr.hbm [resolvable:$true] %s1859
      %1862 = dma.vmem_to_hbm [thread:$0]  %s1858, 128, %s1860, [#allocation5]
    $region153: #{tpu_custom_call.1} parent=1 // pred_fallthru
      _
    // Predicated region
    $region154: #{tpu_custom_call.1} parent=1 // pred_check
      _
    $region155: #{tpu_custom_call.1} parent=1 // pred_check_branch
      %1864 = sbr.rel (0) target = $region157
    $region156: #{tpu_custom_call.1} parent=1 // pred_region
      %1866 = dma.done [#allocation5], 128
    $region157: #{tpu_custom_call.1} parent=1 // pred_fallthru
      _
    %1867 = vsyncpa [#allocation4], 1
    %1868 = vsyncpa [#allocation9], 1
    %1869 = vsyncpa [#allocation12], 1
    %1870 = vsyncpa [#allocation15], 1
    %1871 = vsyncpa [#allocation18], 1
    %1872 = vsyncpa [#allocation21], 1
    %1873 = vsyncpa [#allocation5], 1
    %1874 = vsyncpa [#allocation6], 1

</llo_original>
